<compile_context>
chip_gen: v5e
topology: v5e:2x2
jax: 0.10.0
libtpu: 0.0.40
codegen_flags: <defaults>
</compile_context>

<pallas_src>
import jax
import jax.numpy as jnp
from jax import lax
from jax.experimental import pallas as pl
from jax.experimental.pallas import tpu as pltpu

INPUT_DIMS = 4
INTERNAL_DIMS = 128
HIDDEN = 5          # -> 6 Linear layers total
OUTPUT_DIMS = 3


def _mlp_deformer_kernel(p_ref, tw_ref, w0p_ref,
                         w1_ref, w2_ref, w3_ref, w4_ref, w5_ref,
                         deformed_ref, offsets_ref):
    # p_ref : (3, tile_m) f32   points, feature-major (resident across batch axis)
    # tw_ref: (128, 1)    f32   t[b] * W0[:, time-column]   (per-batch)
    # w0p   : (128, 3)    f32   W0 columns for the xyz inputs
    # w1..w4: (128, 128)  bf16, w5: (3, 128) bf16
    p = p_ref[...]
    tw = tw_ref[...]
    w0p = w0p_ref[...]

    # Layer 0: K=4 -> broadcast FMAs on the VPU in f32 (a systolic pass would
    # waste >95% of the MXU K dimension); the t term is already folded into tw.
    h = (tw
         + w0p[:, 0:1] * p[0:1, :]
         + w0p[:, 1:2] * p[1:2, :]
         + w0p[:, 2:3] * p[2:3, :])                       # (128, tile_m) f32
    h = jnp.maximum(h, 0.0).astype(jnp.bfloat16)

    # Hidden layers: bf16 operands on the MXU, f32 accumulation.
    for w_ref in (w1_ref, w2_ref, w3_ref, w4_ref):
        a = jnp.dot(w_ref[...], h, preferred_element_type=jnp.float32)
        h = jnp.maximum(a, 0.0).astype(jnp.bfloat16)      # (128, tile_m)

    # Output layer -> (3, tile_m), lane-dense stores.
    off = jnp.dot(w5_ref[...], h, preferred_element_type=jnp.float32)
    offsets_ref[...] = off.astype(offsets_ref.dtype)
    # Residual add reuses p straight from the resident input tile (full f32).
    deformed_ref[...] = (p + off).astype(deformed_ref.dtype)


def mlp_deformer_forward(p, t, weights, *, tile_m=2048):
    """p: (m, 3) f32, t: (b,) f32, weights: 6 matrices stored as (in, out)."""
    b = t.shape[0]
    m, d = p.shape
    assert d == OUTPUT_DIMS

    # Clamp the tile to the 128-rounded problem size to avoid excess padding,
    # then pad m up to a multiple of tile_m (padded columns are sliced off).
    m_ceil128 = -(-m // 128) * 128
    tile_m = max(128, min(tile_m, m_ceil128))
    m_tiles = -(-m // tile_m)
    m_pad = m_tiles * tile_m

    p_t = p.T.astype(jnp.float32)                                  # (3, m)
    if m_pad != m:
        p_t = jnp.pad(p_t, ((0, 0), (0, m_pad - m)))

    # Weights. Layer 0 stays f32 (VPU path); MXU layers stored bf16.
    w0 = weights[0].astype(jnp.float32)                            # (4, 128)
    tw = (t.astype(jnp.float32)[:, None] * w0[0][None, :])         # (b, 128)
    tw = tw.reshape(b, INTERNAL_DIMS, 1)
    w0p = w0[1:4, :].T                                             # (128, 3) f32
    wh = [w.T.astype(jnp.bfloat16) for w in weights[1:HIDDEN]]     # 4x (128, 128)
    w5 = weights[HIDDEN].T.astype(jnp.bfloat16)                    # (3, 128)

    flops_per_col = 2 * (INPUT_DIMS * INTERNAL_DIMS
                         + (HIDDEN - 1) * INTERNAL_DIMS * INTERNAL_DIMS
                         + INTERNAL_DIMS * OUTPUT_DIMS)
    weight_bytes = (w0p.size * 4 + tw.size * 4
                    + sum(w.size * 2 for w in wh) + w5.size * 2)
    cost = pl.CostEstimate(
        flops=flops_per_col * b * m_pad,
        transcendentals=0,
        bytes_accessed=OUTPUT_DIMS * m_pad * 4          # p (resident over batch)
                       + weight_bytes
                       + 2 * OUTPUT_DIMS * b * m_pad * 4)   # two outputs

    full_spec = lambda shape: pl.BlockSpec(shape, lambda mi, bi: (0, 0))

    deformed_t, offsets_t = pl.pallas_call(
        _mlp_deformer_kernel,
        out_shape=(
            jax.ShapeDtypeStruct((b, OUTPUT_DIMS, m_pad), jnp.float32),
            jax.ShapeDtypeStruct((b, OUTPUT_DIMS, m_pad), jnp.float32),
        ),
        grid_spec=pltpu.PrefetchScalarGridSpec(
            num_scalar_prefetch=0,
            grid=(m_tiles, b),                 # batch innermost -> p tile resident
            in_specs=[
                pl.BlockSpec((OUTPUT_DIMS, tile_m), lambda mi, bi: (0, mi)),      # p
                pl.BlockSpec((None, INTERNAL_DIMS, 1), lambda mi, bi: (bi, 0, 0)),  # tw
                full_spec((INTERNAL_DIMS, OUTPUT_DIMS)),                          # w0p (f32)
                full_spec((INTERNAL_DIMS, INTERNAL_DIMS)),                        # w1 (bf16)
                full_spec((INTERNAL_DIMS, INTERNAL_DIMS)),                        # w2
                full_spec((INTERNAL_DIMS, INTERNAL_DIMS)),                        # w3
                full_spec((INTERNAL_DIMS, INTERNAL_DIMS)),                        # w4
                full_spec((OUTPUT_DIMS, INTERNAL_DIMS)),                          # w5 (bf16)
            ],
            out_specs=[
                pl.BlockSpec((None, OUTPUT_DIMS, tile_m), lambda mi, bi: (bi, 0, mi)),
                pl.BlockSpec((None, OUTPUT_DIMS, tile_m), lambda mi, bi: (bi, 0, mi)),
            ],
        ),
        compiler_params=pltpu.CompilerParams(
            dimension_semantics=("parallel", "parallel")),
        cost_estimate=cost,
    )(p_t, tw, w0p, *wh, w5)

    deformed = deformed_t[:, :, :m].transpose(0, 2, 1)   # (b, m, 3)
    offsets = offsets_t[:, :, :m].transpose(0, 2, 1)     # (b, m, 3)
    return deformed, offsets


def init_weights(key):
    """Deterministic init mimicking the Linear layer shapes (no biases).

    Weights are stored as (in, out), i.e. x @ w == torch's x @ W.T.
    """
    dims = [INPUT_DIMS] + [INTERNAL_DIMS] * HIDDEN + [OUTPUT_DIMS]
    ws = []
    for i in range(len(dims) - 1):
        key, sub = jax.random.split(key)
        bound = 1.0 / jnp.sqrt(dims[i])
        ws.append(jax.random.uniform(sub, (dims[i], dims[i + 1]),
                                     minval=-bound, maxval=bound,
                                     dtype=jnp.float32))
    return ws


def reference_forward(p, t, weights):
    """Pure-JAX reference with the same precision policy as the kernel:
    layer 0 in f32, remaining matmuls bf16 operands / f32 accumulation."""
    b = t.shape[0]
    m, d = p.shape
    t_e = jnp.broadcast_to(t.astype(jnp.float32)[:, None, None], (b, m, 1))
    p_e = jnp.broadcast_to(p[None, :, :], (b, m, d))
    x = jnp.concatenate([t_e, p_e], axis=-1).reshape(-1, INPUT_DIMS)
    h = jnp.maximum(jnp.dot(x, weights[0], precision=lax.Precision.HIGHEST), 0.0)
    for w in weights[1:HIDDEN]:
        h = jnp.dot(h.astype(jnp.bfloat16), w.astype(jnp.bfloat16),
                    preferred_element_type=jnp.float32)
        h = jnp.maximum(h, 0.0)
    off = jnp.dot(h.astype(jnp.bfloat16), weights[HIDDEN].astype(jnp.bfloat16),
                  preferred_element_type=jnp.float32).reshape(b, m, OUTPUT_DIMS)
    return p[None] + off, off


if __name__ == "__main__":
    key = jax.random.PRNGKey(0)
    k_p, k_t, k_w = jax.random.split(key, 3)

    # b*m = 1024 rows -> grid (m_tiles=1, b=2); both grid steps are independent.
    b, m = 2, 512
    p = jax.random.normal(k_p, (m, 3), dtype=jnp.float32)
    t = jax.random.uniform(k_t, (b,), dtype=jnp.float32)
    weights = init_weights(k_w)

    deformed, offsets = mlp_deformer_forward(p, t, weights)
    deformed = jax.block_until_ready(deformed)
    offsets = jax.block_until_ready(offsets)

    ref_def, ref_off = reference_forward(p, t, weights)
    assert deformed.shape == (b, m, 3) and offsets.shape == (b, m, 3)
    assert jnp.allclose(deformed, ref_def, atol=1e-2, rtol=1e-2)
    assert jnp.allclose(offsets, ref_off, atol=1e-2, rtol=1e-2)

    print("KERNEL_OK")
</pallas_src>

<mosaic_0001>
module attributes {stable_mosaic.version = 11 : i64} {
  func.func @_mlp_deformer_kernel(%arg0: i32, %arg1: i32, %arg2: memref<3x512xf32, #tpu.memory_space<vmem>>, %arg3: memref<1x128x1xf32, #tpu.memory_space<vmem>>, %arg4: memref<128x3xf32, #tpu.memory_space<vmem>>, %arg5: memref<128x128xbf16, #tpu.memory_space<vmem>>, %arg6: memref<128x128xbf16, #tpu.memory_space<vmem>>, %arg7: memref<128x128xbf16, #tpu.memory_space<vmem>>, %arg8: memref<128x128xbf16, #tpu.memory_space<vmem>>, %arg9: memref<3x128xbf16, #tpu.memory_space<vmem>>, %arg10: memref<1x3x512xf32, #tpu.memory_space<vmem>>, %arg11: memref<1x3x512xf32, #tpu.memory_space<vmem>>) attributes {dimension_semantics = [#tpu.dimension_semantics<parallel>, #tpu.dimension_semantics<parallel>], iteration_bounds = array<i64: 1, 2>, scalar_prefetch = 0 : i64, scratch_operands = 0 : i64, tpu.core_type = #tpu.core_type<tc>, window_params = [{transform_indices = @transform_0, window_bounds = array<i64: 3, 512>}, {transform_indices = @transform_1, window_bounds = array<i64: 1, 128, 1>}, {pipeline_mode = #tpu.pipeline_mode<synchronous>, transform_indices = @transform_2, window_bounds = array<i64: 128, 3>}, {pipeline_mode = #tpu.pipeline_mode<synchronous>, transform_indices = @transform_3, window_bounds = array<i64: 128, 128>}, {pipeline_mode = #tpu.pipeline_mode<synchronous>, transform_indices = @transform_4, window_bounds = array<i64: 128, 128>}, {pipeline_mode = #tpu.pipeline_mode<synchronous>, transform_indices = @transform_5, window_bounds = array<i64: 128, 128>}, {pipeline_mode = #tpu.pipeline_mode<synchronous>, transform_indices = @transform_6, window_bounds = array<i64: 128, 128>}, {pipeline_mode = #tpu.pipeline_mode<synchronous>, transform_indices = @transform_7, window_bounds = array<i64: 3, 128>}, {transform_indices = @transform_8, window_bounds = array<i64: 1, 3, 512>}, {transform_indices = @transform_9, window_bounds = array<i64: 1, 3, 512>}]} {
    %c0 = arith.constant 0 : index
    %c0_0 = arith.constant 0 : index
    %0 = vector.load %arg2[%c0, %c0_0] : memref<3x512xf32, #tpu.memory_space<vmem>>, vector<3x512xf32>
    %c0_1 = arith.constant 0 : index
    %c0_2 = arith.constant 0 : index
    %c0_3 = arith.constant 0 : index
    %1 = vector.load %arg3[%c0_1, %c0_2, %c0_3] : memref<1x128x1xf32, #tpu.memory_space<vmem>>, vector<1x128x1xf32>
    %2 = vector.shape_cast %1 : vector<1x128x1xf32> to vector<128x1xf32>
    %c0_4 = arith.constant 0 : index
    %c0_5 = arith.constant 0 : index
    %3 = vector.load %arg4[%c0_4, %c0_5] : memref<128x3xf32, #tpu.memory_space<vmem>>, vector<128x3xf32>
    %4 = vector.extract_strided_slice %3 {offsets = [0, 0], sizes = [128, 1], strides = [1, 1]} : vector<128x3xf32> to vector<128x1xf32>
    %5 = vector.extract_strided_slice %0 {offsets = [0, 0], sizes = [1, 512], strides = [1, 1]} : vector<3x512xf32> to vector<1x512xf32>
    %6 = vector.broadcast %4 : vector<128x1xf32> to vector<128x512xf32>
    %7 = vector.broadcast %5 : vector<1x512xf32> to vector<128x512xf32>
    %8 = arith.mulf %6, %7 : vector<128x512xf32>
    %9 = vector.broadcast %2 : vector<128x1xf32> to vector<128x512xf32>
    %10 = arith.addf %9, %8 : vector<128x512xf32>
    %11 = vector.extract_strided_slice %3 {offsets = [0, 1], sizes = [128, 1], strides = [1, 1]} : vector<128x3xf32> to vector<128x1xf32>
    %12 = vector.extract_strided_slice %0 {offsets = [1, 0], sizes = [1, 512], strides = [1, 1]} : vector<3x512xf32> to vector<1x512xf32>
    %13 = vector.broadcast %11 : vector<128x1xf32> to vector<128x512xf32>
    %14 = vector.broadcast %12 : vector<1x512xf32> to vector<128x512xf32>
    %15 = arith.mulf %13, %14 : vector<128x512xf32>
    %16 = arith.addf %10, %15 : vector<128x512xf32>
    %17 = vector.extract_strided_slice %3 {offsets = [0, 2], sizes = [128, 1], strides = [1, 1]} : vector<128x3xf32> to vector<128x1xf32>
    %18 = vector.extract_strided_slice %0 {offsets = [2, 0], sizes = [1, 512], strides = [1, 1]} : vector<3x512xf32> to vector<1x512xf32>
    %19 = vector.broadcast %17 : vector<128x1xf32> to vector<128x512xf32>
    %20 = vector.broadcast %18 : vector<1x512xf32> to vector<128x512xf32>
    %21 = arith.mulf %19, %20 : vector<128x512xf32>
    %22 = arith.addf %16, %21 : vector<128x512xf32>
    %cst = arith.constant 0.000000e+00 : f32
    %23 = vector.broadcast %cst : f32 to vector<128x512xf32>
    %24 = arith.maximumf %22, %23 : vector<128x512xf32>
    %25 = arith.truncf %24 : vector<128x512xf32> to vector<128x512xbf16>
    %c0_6 = arith.constant 0 : index
    %c0_7 = arith.constant 0 : index
    %26 = vector.load %arg5[%c0_6, %c0_7] : memref<128x128xbf16, #tpu.memory_space<vmem>>, vector<128x128xbf16>
    %cst_8 = arith.constant dense<0.000000e+00> : vector<128x512xf32>
    %27 = tpu.matmul %26, %25, %cst_8 {dimension_numbers = #tpu.dot_dimension_numbers<[1], [0], [0], [1], [0, 0, 1, 1], [], []>} : vector<128x128xbf16>, vector<128x512xbf16>, vector<128x512xf32> -> vector<128x512xf32>
    %cst_9 = arith.constant 0.000000e+00 : f32
    %28 = vector.broadcast %cst_9 : f32 to vector<128x512xf32>
    %29 = arith.maximumf %27, %28 : vector<128x512xf32>
    %30 = arith.truncf %29 : vector<128x512xf32> to vector<128x512xbf16>
    %c0_10 = arith.constant 0 : index
    %c0_11 = arith.constant 0 : index
    %31 = vector.load %arg6[%c0_10, %c0_11] : memref<128x128xbf16, #tpu.memory_space<vmem>>, vector<128x128xbf16>
    %cst_12 = arith.constant dense<0.000000e+00> : vector<128x512xf32>
    %32 = tpu.matmul %31, %30, %cst_12 {dimension_numbers = #tpu.dot_dimension_numbers<[1], [0], [0], [1], [0, 0, 1, 1], [], []>} : vector<128x128xbf16>, vector<128x512xbf16>, vector<128x512xf32> -> vector<128x512xf32>
    %cst_13 = arith.constant 0.000000e+00 : f32
    %33 = vector.broadcast %cst_13 : f32 to vector<128x512xf32>
    %34 = arith.maximumf %32, %33 : vector<128x512xf32>
    %35 = arith.truncf %34 : vector<128x512xf32> to vector<128x512xbf16>
    %c0_14 = arith.constant 0 : index
    %c0_15 = arith.constant 0 : index
    %36 = vector.load %arg7[%c0_14, %c0_15] : memref<128x128xbf16, #tpu.memory_space<vmem>>, vector<128x128xbf16>
    %cst_16 = arith.constant dense<0.000000e+00> : vector<128x512xf32>
    %37 = tpu.matmul %36, %35, %cst_16 {dimension_numbers = #tpu.dot_dimension_numbers<[1], [0], [0], [1], [0, 0, 1, 1], [], []>} : vector<128x128xbf16>, vector<128x512xbf16>, vector<128x512xf32> -> vector<128x512xf32>
    %cst_17 = arith.constant 0.000000e+00 : f32
    %38 = vector.broadcast %cst_17 : f32 to vector<128x512xf32>
    %39 = arith.maximumf %37, %38 : vector<128x512xf32>
    %40 = arith.truncf %39 : vector<128x512xf32> to vector<128x512xbf16>
    %c0_18 = arith.constant 0 : index
    %c0_19 = arith.constant 0 : index
    %41 = vector.load %arg8[%c0_18, %c0_19] : memref<128x128xbf16, #tpu.memory_space<vmem>>, vector<128x128xbf16>
    %cst_20 = arith.constant dense<0.000000e+00> : vector<128x512xf32>
    %42 = tpu.matmul %41, %40, %cst_20 {dimension_numbers = #tpu.dot_dimension_numbers<[1], [0], [0], [1], [0, 0, 1, 1], [], []>} : vector<128x128xbf16>, vector<128x512xbf16>, vector<128x512xf32> -> vector<128x512xf32>
    %cst_21 = arith.constant 0.000000e+00 : f32
    %43 = vector.broadcast %cst_21 : f32 to vector<128x512xf32>
    %44 = arith.maximumf %42, %43 : vector<128x512xf32>
    %45 = arith.truncf %44 : vector<128x512xf32> to vector<128x512xbf16>
    %c0_22 = arith.constant 0 : index
    %c0_23 = arith.constant 0 : index
    %46 = vector.load %arg9[%c0_22, %c0_23] : memref<3x128xbf16, #tpu.memory_space<vmem>>, vector<3x128xbf16>
    %cst_24 = arith.constant dense<0.000000e+00> : vector<3x512xf32>
    %47 = tpu.matmul %46, %45, %cst_24 {dimension_numbers = #tpu.dot_dimension_numbers<[1], [0], [0], [1], [0, 0, 1, 1], [], []>} : vector<3x128xbf16>, vector<128x512xbf16>, vector<3x512xf32> -> vector<3x512xf32>
    %c0_25 = arith.constant 0 : index
    %c0_26 = arith.constant 0 : index
    %c0_27 = arith.constant 0 : index
    %48 = vector.load %arg11[%c0_25, %c0_26, %c0_27] : memref<1x3x512xf32, #tpu.memory_space<vmem>>, vector<1x3x512xf32>
    %49 = vector.shape_cast %48 : vector<1x3x512xf32> to vector<3x512xf32>
    %50 = vector.shape_cast %47 : vector<3x512xf32> to vector<1x3x512xf32>
    tpu.vector_store %arg11[%c0_25, %c0_26, %c0_27], %50 {strides = array<i32>} : memref<1x3x512xf32, #tpu.memory_space<vmem>>, vector<1x3x512xf32>,
    %51 = arith.addf %0, %47 : vector<3x512xf32>
    %c0_28 = arith.constant 0 : index
    %c0_29 = arith.constant 0 : index
    %c0_30 = arith.constant 0 : index
    %52 = vector.load %arg10[%c0_28, %c0_29, %c0_30] : memref<1x3x512xf32, #tpu.memory_space<vmem>>, vector<1x3x512xf32>
    %53 = vector.shape_cast %52 : vector<1x3x512xf32> to vector<3x512xf32>
    %54 = vector.shape_cast %51 : vector<3x512xf32> to vector<1x3x512xf32>
    tpu.vector_store %arg10[%c0_28, %c0_29, %c0_30], %54 {strides = array<i32>} : memref<1x3x512xf32, #tpu.memory_space<vmem>>, vector<1x3x512xf32>,
    return
  }
  func.func @transform_0(%arg0: i32, %arg1: i32) -> (i32, i32) {
    %c0_i32 = arith.constant 0 : i32
    %c0_i32_0 = arith.constant 0 : i32
    return %c0_i32, %arg0 : i32, i32
  }
  func.func @transform_1(%arg0: i32, %arg1: i32) -> (i32, i32, i32) {
    %c0_i32 = arith.constant 0 : i32
    %c0_i32_0 = arith.constant 0 : i32
    %c0_i32_1 = arith.constant 0 : i32
    return %arg1, %c0_i32, %c0_i32_0 : i32, i32, i32
  }
  func.func @transform_2(%arg0: i32, %arg1: i32) -> (i32, i32) {
    %c0_i32 = arith.constant 0 : i32
    %c0_i32_0 = arith.constant 0 : i32
    %c0_i32_1 = arith.constant 0 : i32
    return %c0_i32, %c0_i32_0 : i32, i32
  }
  func.func @transform_3(%arg0: i32, %arg1: i32) -> (i32, i32) {
    %c0_i32 = arith.constant 0 : i32
    %c0_i32_0 = arith.constant 0 : i32
    %c0_i32_1 = arith.constant 0 : i32
    return %c0_i32, %c0_i32_0 : i32, i32
  }
  func.func @transform_4(%arg0: i32, %arg1: i32) -> (i32, i32) {
    %c0_i32 = arith.constant 0 : i32
    %c0_i32_0 = arith.constant 0 : i32
    %c0_i32_1 = arith.constant 0 : i32
    return %c0_i32, %c0_i32_0 : i32, i32
  }
  func.func @transform_5(%arg0: i32, %arg1: i32) -> (i32, i32) {
    %c0_i32 = arith.constant 0 : i32
    %c0_i32_0 = arith.constant 0 : i32
    %c0_i32_1 = arith.constant 0 : i32
    return %c0_i32, %c0_i32_0 : i32, i32
  }
  func.func @transform_6(%arg0: i32, %arg1: i32) -> (i32, i32) {
    %c0_i32 = arith.constant 0 : i32
    %c0_i32_0 = arith.constant 0 : i32
    %c0_i32_1 = arith.constant 0 : i32
    return %c0_i32, %c0_i32_0 : i32, i32
  }
  func.func @transform_7(%arg0: i32, %arg1: i32) -> (i32, i32) {
    %c0_i32 = arith.constant 0 : i32
    %c0_i32_0 = arith.constant 0 : i32
    %c0_i32_1 = arith.constant 0 : i32
    return %c0_i32, %c0_i32_0 : i32, i32
  }
  func.func @transform_8(%arg0: i32, %arg1: i32) -> (i32, i32, i32) {
    %c0_i32 = arith.constant 0 : i32
    %c0_i32_0 = arith.constant 0 : i32
    return %arg1, %c0_i32, %arg0 : i32, i32, i32
  }
  func.func @transform_9(%arg0: i32, %arg1: i32) -> (i32, i32, i32) {
    %c0_i32 = arith.constant 0 : i32
    %c0_i32_0 = arith.constant 0 : i32
    return %arg1, %c0_i32, %arg0 : i32, i32, i32
  }
}

</mosaic_0001>

<llo_original>
// kernel: tpu_custom_call.1
$region0: #{tpu_custom_call.1}
  #allocation0 [shape = 'u32[]', space=smem, size = 0x4, offset = 0x4, fixed_abs, tag = 'smem constant byte address 0x4 - core index']
  #allocation1 [shape = 'u32[72,128]{1,0:T(1,128)}', space=vmem, size = 0x9000, scoped, tag = 'internal scratch']
  %s0 = inlined_call_operand.vmem [shape: f32[3,512], index: 0, kind: input, shape index: {}]
  %s1 = inlined_call_operand.vmem [shape: f32[2,128,1], index: 1, kind: input, shape index: {}]
  %s2 = inlined_call_operand.vmem [shape: f32[128,3], index: 2, kind: input, shape index: {}]
  %s3 = inlined_call_operand.vmem [shape: bf16[128,128], index: 3, kind: input, shape index: {}]
  %s4 = inlined_call_operand.vmem [shape: bf16[128,128], index: 4, kind: input, shape index: {}]
  %s5 = inlined_call_operand.vmem [shape: bf16[128,128], index: 5, kind: input, shape index: {}]
  %s6 = inlined_call_operand.vmem [shape: bf16[128,128], index: 6, kind: input, shape index: {}]
  %s7 = inlined_call_operand.vmem [shape: bf16[3,128], index: 7, kind: input, shape index: {}]
  %s8 = inlined_call_operand.vmem [shape: f32[2,3,512], index: 8, kind: output, shape index: {0}]
  %s9 = inlined_call_operand.vmem [shape: f32[2,3,512], index: 9, kind: output, shape index: {1}]
  %10 = xla_tuple %s8, %s9
  %s11 = sld [smem:[#allocation0]]
  $region73: #{tpu_custom_call.1} parent=0
    _
  %s13 = ssub.s32 1, %s11
  %s14 = scalar_select 0, %s13, %s11
  loop: start=0, step=1, limit=4
  $region2: #{tpu_custom_call.1} parent=0 // loop_pre_header
    _
  $region3: #{tpu_custom_call.1} parent=0 // loop_header
    %s16 = sphi 0, %s20
    %p17 = scmp.ge.s32.totalorder %s16, 4
    %s23 = sphi 0, %s35
    %s24 = sphi 0, %s31
    %s25 = sphi 0, %s23
    %s26 = sphi 0, %s24
    %s27 = sphi 0, %s25
    %s28 = sphi 0, %s26
    %s38 = sphi 0, %s40
    %s41 = sphi 0, %s38
    %s42 = sphi 0, %s41
    %s58 = sphi 0, %s42
    %s64 = sphi 0, %s66
    %s67 = sphi 0, %s64
    %s68 = sphi 0, %s67
    %s84 = sphi 0, %s68
    %s88 = sphi 0, %s88
    %s90 = sphi 0, %s88
    %s91 = sphi 0, %s90
    %s105 = sphi 0, %s91
    %s109 = sphi 0, %s109
    %s111 = sphi 0, %s109
    %s112 = sphi 0, %s111
    %s126 = sphi 0, %s112
    %s130 = sphi 0, %s130
    %s132 = sphi 0, %s130
    %s133 = sphi 0, %s132
    %s147 = sphi 0, %s133
    %s151 = sphi 0, %s151
    %s153 = sphi 0, %s151
    %s154 = sphi 0, %s153
    %s168 = sphi 0, %s154
    %s172 = sphi 0, %s172
    %s174 = sphi 0, %s172
    %s175 = sphi 0, %s174
    %s189 = sphi 0, %s175
    %s193 = sphi 0, %s193
    %s195 = sphi 0, %s193
    %s196 = sphi 0, %s195
    %s210 = sphi 0, %s196
    %s218 = sphi 0, %s220
    %s221 = sphi 0, %s218
    %s222 = sphi 0, %s221
    %s238 = sphi 0, %s222
    %s246 = sphi 0, %s248
    %s249 = sphi 0, %s246
    %s250 = sphi 0, %s249
    %s266 = sphi 0, %s250
  $region4: #{tpu_custom_call.1} parent=0 // loop_header_branch
    %19 = sbr.rel (%p17) target = $region8
  $region5: #{tpu_custom_call.1} parent=0 // loop_body
    %s21 = ssub.s32 %s16, 1
    %s22 = ssub.s32 %s16, 2
    %s29 = sadd.s32 1, %s24
    %p30 = scmp.ge.s32.totalorder %s29, 2
    %s31 = scalar_select %p30, 0, %s29
    %s32 = sadd.s32 1, %s23
    %s33 = scalar_select %p30, %s32, %s23
    %p34 = scmp.ge.s32.totalorder %s33, 1
    %s35 = scalar_select %p34, 0, %s33
    %s36 = ssub.s32 %s23, %s35
    %p37 = scmp.eq.s32.totalorder %s36, 0
    %s39 = sadd.s32 %s38, 1
    %s40 = scalar_select %p37, %s38, %s39
    %p43 = pneg %p37
    %p44 = scmp.eq.s32.totalorder %s16, 1
    %p45 = por %p43, %p44
    %p46 = scmp.ne.s32.totalorder %s38, %s41
    %p47 = scmp.eq.s32.totalorder %s16, 0
    %p48 = por %p46, %p47
    %p49 = scmp.ne.s32.totalorder %s38, %s41
    %p50 = scmp.eq.s32.totalorder %s21, 1
    %p51 = por %p49, %p50
    %p52 = scmp.ne.s32.totalorder %s41, %s42
    %p53 = scmp.eq.s32.totalorder %s21, 0
    %p54 = por %p52, %p53
    %p55 = scmp.ne.s32.totalorder %s41, %s42
    %p56 = scmp.eq.s32.totalorder %s22, 1
    %p57 = por %p55, %p56
    %p59 = scmp.ne.s32.totalorder %s42, %s58
    %p60 = scmp.eq.s32.totalorder %s22, 0
    %p61 = por %p59, %p60
    %s62 = ssub.s32 %s24, %s31
    %p63 = scmp.eq.s32.totalorder %s62, 0
    %s65 = sadd.s32 %s64, 1
    %s66 = scalar_select %p63, %s64, %s65
    %p69 = pneg %p63
    %p70 = scmp.eq.s32.totalorder %s16, 1
    %p71 = por %p69, %p70
    %p72 = scmp.ne.s32.totalorder %s64, %s67
    %p73 = scmp.eq.s32.totalorder %s16, 0
    %p74 = por %p72, %p73
    %p75 = scmp.ne.s32.totalorder %s64, %s67
    %p76 = scmp.eq.s32.totalorder %s21, 1
    %p77 = por %p75, %p76
    %p78 = scmp.ne.s32.totalorder %s67, %s68
    %p79 = scmp.eq.s32.totalorder %s21, 0
    %p80 = por %p78, %p79
    %p81 = scmp.ne.s32.totalorder %s67, %s68
    %p82 = scmp.eq.s32.totalorder %s22, 1
    %p83 = por %p81, %p82
    %p85 = scmp.ne.s32.totalorder %s68, %s84
    %p86 = scmp.eq.s32.totalorder %s22, 0
    %p87 = por %p85, %p86
    %s89 = sadd.s32 %s88, 1
    %p92 = scmp.eq.s32.totalorder %s16, 1
    %p93 = scmp.ne.s32.totalorder %s88, %s90
    %p94 = scmp.eq.s32.totalorder %s16, 0
    %p95 = por %p93, %p94
    %p96 = scmp.ne.s32.totalorder %s88, %s90
    %p97 = scmp.eq.s32.totalorder %s21, 1
    %p98 = por %p96, %p97
    %p99 = scmp.ne.s32.totalorder %s90, %s91
    %p100 = scmp.eq.s32.totalorder %s21, 0
    %p101 = por %p99, %p100
    %p102 = scmp.ne.s32.totalorder %s90, %s91
    %p103 = scmp.eq.s32.totalorder %s22, 1
    %p104 = por %p102, %p103
    %p106 = scmp.ne.s32.totalorder %s91, %s105
    %p107 = scmp.eq.s32.totalorder %s22, 0
    %p108 = por %p106, %p107
    %s110 = sadd.s32 %s109, 1
    %p113 = scmp.eq.s32.totalorder %s16, 1
    %p114 = scmp.ne.s32.totalorder %s109, %s111
    %p115 = scmp.eq.s32.totalorder %s16, 0
    %p116 = por %p114, %p115
    %p117 = scmp.ne.s32.totalorder %s109, %s111
    %p118 = scmp.eq.s32.totalorder %s21, 1
    %p119 = por %p117, %p118
    %p120 = scmp.ne.s32.totalorder %s111, %s112
    %p121 = scmp.eq.s32.totalorder %s21, 0
    %p122 = por %p120, %p121
    %p123 = scmp.ne.s32.totalorder %s111, %s112
    %p124 = scmp.eq.s32.totalorder %s22, 1
    %p125 = por %p123, %p124
    %p127 = scmp.ne.s32.totalorder %s112, %s126
    %p128 = scmp.eq.s32.totalorder %s22, 0
    %p129 = por %p127, %p128
    %s131 = sadd.s32 %s130, 1
    %p134 = scmp.eq.s32.totalorder %s16, 1
    %p135 = scmp.ne.s32.totalorder %s130, %s132
    %p136 = scmp.eq.s32.totalorder %s16, 0
    %p137 = por %p135, %p136
    %p138 = scmp.ne.s32.totalorder %s130, %s132
    %p139 = scmp.eq.s32.totalorder %s21, 1
    %p140 = por %p138, %p139
    %p141 = scmp.ne.s32.totalorder %s132, %s133
    %p142 = scmp.eq.s32.totalorder %s21, 0
    %p143 = por %p141, %p142
    %p144 = scmp.ne.s32.totalorder %s132, %s133
    %p145 = scmp.eq.s32.totalorder %s22, 1
    %p146 = por %p144, %p145
    %p148 = scmp.ne.s32.totalorder %s133, %s147
    %p149 = scmp.eq.s32.totalorder %s22, 0
    %p150 = por %p148, %p149
    %s152 = sadd.s32 %s151, 1
    %p155 = scmp.eq.s32.totalorder %s16, 1
    %p156 = scmp.ne.s32.totalorder %s151, %s153
    %p157 = scmp.eq.s32.totalorder %s16, 0
    %p158 = por %p156, %p157
    %p159 = scmp.ne.s32.totalorder %s151, %s153
    %p160 = scmp.eq.s32.totalorder %s21, 1
    %p161 = por %p159, %p160
    %p162 = scmp.ne.s32.totalorder %s153, %s154
    %p163 = scmp.eq.s32.totalorder %s21, 0
    %p164 = por %p162, %p163
    %p165 = scmp.ne.s32.totalorder %s153, %s154
    %p166 = scmp.eq.s32.totalorder %s22, 1
    %p167 = por %p165, %p166
    %p169 = scmp.ne.s32.totalorder %s154, %s168
    %p170 = scmp.eq.s32.totalorder %s22, 0
    %p171 = por %p169, %p170
    %s173 = sadd.s32 %s172, 1
    %p176 = scmp.eq.s32.totalorder %s16, 1
    %p177 = scmp.ne.s32.totalorder %s172, %s174
    %p178 = scmp.eq.s32.totalorder %s16, 0
    %p179 = por %p177, %p178
    %p180 = scmp.ne.s32.totalorder %s172, %s174
    %p181 = scmp.eq.s32.totalorder %s21, 1
    %p182 = por %p180, %p181
    %p183 = scmp.ne.s32.totalorder %s174, %s175
    %p184 = scmp.eq.s32.totalorder %s21, 0
    %p185 = por %p183, %p184
    %p186 = scmp.ne.s32.totalorder %s174, %s175
    %p187 = scmp.eq.s32.totalorder %s22, 1
    %p188 = por %p186, %p187
    %p190 = scmp.ne.s32.totalorder %s175, %s189
    %p191 = scmp.eq.s32.totalorder %s22, 0
    %p192 = por %p190, %p191
    %s194 = sadd.s32 %s193, 1
    %p197 = scmp.eq.s32.totalorder %s16, 1
    %p198 = scmp.ne.s32.totalorder %s193, %s195
    %p199 = scmp.eq.s32.totalorder %s16, 0
    %p200 = por %p198, %p199
    %p201 = scmp.ne.s32.totalorder %s193, %s195
    %p202 = scmp.eq.s32.totalorder %s21, 1
    %p203 = por %p201, %p202
    %p204 = scmp.ne.s32.totalorder %s195, %s196
    %p205 = scmp.eq.s32.totalorder %s21, 0
    %p206 = por %p204, %p205
    %p207 = scmp.ne.s32.totalorder %s195, %s196
    %p208 = scmp.eq.s32.totalorder %s22, 1
    %p209 = por %p207, %p208
    %p211 = scmp.ne.s32.totalorder %s196, %s210
    %p212 = scmp.eq.s32.totalorder %s22, 0
    %p213 = por %p211, %p212
    %s214 = ssub.s32 %s24, %s31
    %s215 = ssub.s32 %s23, %s35
    %s216 = sor.u32 %s214, %s215
    %p217 = scmp.eq.s32.totalorder %s216, 0
    %s219 = sadd.s32 %s218, 1
    %s220 = scalar_select %p217, %s218, %s219
    %p223 = pneg %p217
    %p224 = scmp.eq.s32.totalorder %s16, 1
    %p225 = por %p223, %p224
    %p226 = scmp.ne.s32.totalorder %s218, %s221
    %p227 = scmp.eq.s32.totalorder %s16, 0
    %p228 = por %p226, %p227
    %p229 = scmp.ne.s32.totalorder %s218, %s221
    %p230 = scmp.eq.s32.totalorder %s21, 1
    %p231 = por %p229, %p230
    %p232 = scmp.ne.s32.totalorder %s221, %s222
    %p233 = scmp.eq.s32.totalorder %s21, 0
    %p234 = por %p232, %p233
    %p235 = scmp.ne.s32.totalorder %s221, %s222
    %p236 = scmp.eq.s32.totalorder %s22, 1
    %p237 = por %p235, %p236
    %p239 = scmp.ne.s32.totalorder %s222, %s238
    %p240 = scmp.eq.s32.totalorder %s22, 0
    %p241 = por %p239, %p240
    %s242 = ssub.s32 %s24, %s31
    %s243 = ssub.s32 %s23, %s35
    %s244 = sor.u32 %s242, %s243
    %p245 = scmp.eq.s32.totalorder %s244, 0
    %s247 = sadd.s32 %s246, 1
    %s248 = scalar_select %p245, %s246, %s247
    %p251 = pneg %p245
    %p252 = scmp.eq.s32.totalorder %s16, 1
    %p253 = por %p251, %p252
    %p254 = scmp.ne.s32.totalorder %s246, %s249
    %p255 = scmp.eq.s32.totalorder %s16, 0
    %p256 = por %p254, %p255
    %p257 = scmp.ne.s32.totalorder %s246, %s249
    %p258 = scmp.eq.s32.totalorder %s21, 1
    %p259 = por %p257, %p258
    %p260 = scmp.ne.s32.totalorder %s249, %s250
    %p261 = scmp.eq.s32.totalorder %s21, 0
    %p262 = por %p260, %p261
    %p263 = scmp.ne.s32.totalorder %s249, %s250
    %p264 = scmp.eq.s32.totalorder %s22, 1
    %p265 = por %p263, %p264
    %p267 = scmp.ne.s32.totalorder %s250, %s266
    %p268 = scmp.eq.s32.totalorder %s22, 0
    %p269 = por %p267, %p268
    %p270 = scmp.le.s32.totalorder 1, %s16
    %p271 = scmp.lt.s32.totalorder %s16, 3
    %p272 = pnand %p270, %p271
    %p273 = pneg %p272
    // Predicated region
    $region9: #{tpu_custom_call.1} parent=5 // pred_check
      _
    $region10: #{tpu_custom_call.1} parent=5 // pred_check_branch
      %275 = sbr.rel (%p272) target = $region12
    $region11: #{tpu_custom_call.1} parent=5 // pred_region
      %s276 = ssub.s32 %s16, 1
      // Predicated region
      $region13: #{tpu_custom_call.1} parent=11 // pred_check
        %p277 = pneg %p54
      $region14: #{tpu_custom_call.1} parent=11 // pred_check_branch
        %279 = sbr.rel (%p277) target = $region16
      $region15: #{tpu_custom_call.1} parent=11 // pred_region
        %s280 = smul.u32 4, %s25
        %p281 = scmp.lt.s32.totalorder %s280, 3
        %s282 = scalar_select %p281, %s280, 3
        %s283 = smul.addr %s282, 4
        %s284 = scalar_lea.vmem %s0, %s283
        %s285 = smul.u32 4, %s25
      $region16: #{tpu_custom_call.1} parent=11 // pred_fallthru
        _
      // Predicated region
      $region17: #{tpu_custom_call.1} parent=11 // pred_check
        %p286 = pneg %p101
      $region18: #{tpu_custom_call.1} parent=11 // pred_check_branch
        %288 = sbr.rel (%p286) target = $region20
      $region19: #{tpu_custom_call.1} parent=11 // pred_region
        _
      $region20: #{tpu_custom_call.1} parent=11 // pred_fallthru
        _
      // Predicated region
      $region21: #{tpu_custom_call.1} parent=11 // pred_check
        %p289 = pneg %p122
      $region22: #{tpu_custom_call.1} parent=11 // pred_check_branch
        %291 = sbr.rel (%p289) target = $region24
      $region23: #{tpu_custom_call.1} parent=11 // pred_region
        _
      $region24: #{tpu_custom_call.1} parent=11 // pred_fallthru
        _
      // Predicated region
      $region25: #{tpu_custom_call.1} parent=11 // pred_check
        %p292 = pneg %p143
      $region26: #{tpu_custom_call.1} parent=11 // pred_check_branch
        %294 = sbr.rel (%p292) target = $region28
      $region27: #{tpu_custom_call.1} parent=11 // pred_region
        _
      $region28: #{tpu_custom_call.1} parent=11 // pred_fallthru
        _
      // Predicated region
      $region29: #{tpu_custom_call.1} parent=11 // pred_check
        %p295 = pneg %p164
      $region30: #{tpu_custom_call.1} parent=11 // pred_check_branch
        %297 = sbr.rel (%p295) target = $region32
      $region31: #{tpu_custom_call.1} parent=11 // pred_region
        _
      $region32: #{tpu_custom_call.1} parent=11 // pred_fallthru
        _
      // Predicated region
      $region33: #{tpu_custom_call.1} parent=11 // pred_check
        %p298 = pneg %p185
      $region34: #{tpu_custom_call.1} parent=11 // pred_check_branch
        %300 = sbr.rel (%p298) target = $region36
      $region35: #{tpu_custom_call.1} parent=11 // pred_region
        _
      $region36: #{tpu_custom_call.1} parent=11 // pred_fallthru
        _
      // Predicated region
      $region37: #{tpu_custom_call.1} parent=11 // pred_check
        %p301 = pneg %p206
      $region38: #{tpu_custom_call.1} parent=11 // pred_check_branch
        %303 = sbr.rel (%p301) target = $region40
      $region39: #{tpu_custom_call.1} parent=11 // pred_region
        _
      $region40: #{tpu_custom_call.1} parent=11 // pred_fallthru
        _
    $region12: #{tpu_custom_call.1} parent=5 // pred_fallthru
      _
    %p304 = scmp.lt.s32.totalorder %s16, 2
    // Predicated region
    $region41: #{tpu_custom_call.1} parent=5 // pred_check
      %p305 = pneg %p304
    $region42: #{tpu_custom_call.1} parent=5 // pred_check_branch
      %307 = sbr.rel (%p305) target = $region44
    $region43: #{tpu_custom_call.1} parent=5 // pred_region
      // Predicated region
      $region45: #{tpu_custom_call.1} parent=43 // pred_check
        %p308 = pneg %p74
      $region46: #{tpu_custom_call.1} parent=43 // pred_check_branch
        %310 = sbr.rel (%p308) target = $region48
      $region47: #{tpu_custom_call.1} parent=43 // pred_region
        %p311 = scmp.lt.s32.totalorder %s24, 1
        %s312 = scalar_select %p311, %s24, 1
        %s313 = smul.addr %s312, 16
        %s314 = smul.addr %s313, 8
        %s315 = scalar_lea.vmem %s1, %s314
      $region48: #{tpu_custom_call.1} parent=43 // pred_fallthru
        _
    $region44: #{tpu_custom_call.1} parent=5 // pred_fallthru
      _
    %p316 = scmp.le.s32.totalorder 1, %s16
    %p317 = scmp.lt.s32.totalorder %s16, 3
    %p318 = pnand %p316, %p317
    %p319 = pneg %p318
    // Predicated region
    $region49: #{tpu_custom_call.1} parent=5 // pred_check
      _
    $region50: #{tpu_custom_call.1} parent=5 // pred_check_branch
      %321 = sbr.rel (%p318) target = $region52
    $region51: #{tpu_custom_call.1} parent=5 // pred_region
      %s322 = ssub.s32 %s16, 1
      %s323 = smul.u32 4, %s25
      %p324 = scmp.lt.s32.totalorder %s323, 3
      %s325 = scalar_select %p324, %s323, 3
      %s326 = smul.addr %s325, 4
      %s327 = scalar_lea.vmem %s0, %s326
      %p328 = pneg %p54
      %p329 = pneg %p51
      %p330 = scmp.lt.s32.totalorder %s26, 1
      %s331 = scalar_select %p330, %s26, 1
      %s332 = smul.addr %s331, 16
      %s333 = smul.addr %s332, 8
      %s334 = scalar_lea.vmem %s1, %s333
      %p335 = pneg %p80
      %p336 = pneg %p77
      %p337 = pneg %p101
      %p338 = pneg %p98
      %p339 = pneg %p122
      %p340 = pneg %p119
      %p341 = pneg %p143
      %p342 = pneg %p140
      %p343 = pneg %p164
      %p344 = pneg %p161
      %p345 = pneg %p185
      %p346 = pneg %p182
      %p347 = pneg %p206
      %p348 = pneg %p203
      %p349 = pneg %p234
      %p350 = pneg %p231
      %s351 = smul.u32 4, %s25
      %p352 = scmp.lt.s32.totalorder %s26, 1
      %s353 = scalar_select %p352, %s26, 1
      %p354 = scmp.lt.s32.totalorder %s351, 3
      %s355 = scalar_select %p354, %s351, 3
      %s356 = smul.addr %s353, 4
      %s357 = sadd.s32 %s355, %s356
      %s358 = smul.addr %s357, 4
      %s359 = scalar_lea.vmem %s8, %s358
      %p360 = pneg %p262
      %p361 = pneg %p259
      %s362 = smul.u32 4, %s25
      %p363 = scmp.lt.s32.totalorder %s26, 1
      %s364 = scalar_select %p363, %s26, 1
      %p365 = scmp.lt.s32.totalorder %s362, 3
      %s366 = scalar_select %p365, %s362, 3
      %s367 = smul.addr %s364, 4
      %s368 = sadd.s32 %s366, %s367
      %s369 = smul.addr %s368, 4
      %s370 = scalar_lea.vmem %s9, %s369
      %s371 = smul.u32 4, %s25
      %p372 = scmp.lt.s32.totalorder %s371, 3
      %s373 = scalar_select %p372, %s371, 3
      %s374 = smul.addr %s373, 4
      %s375 = scalar_lea.vmem %s0, %s374
      %s376 = smul.u32 4, %s25
      %p377 = scmp.lt.s32.totalorder %s26, 1
      %s378 = scalar_select %p377, %s26, 1
      %s379 = smul.addr %s378, 16
      %s380 = smul.addr %s379, 8
      %s381 = scalar_lea.vmem %s1, %s380
      %s382 = smul.u32 4, %s25
      %p383 = scmp.lt.s32.totalorder %s26, 1
      %s384 = scalar_select %p383, %s26, 1
      %p385 = scmp.lt.s32.totalorder %s382, 3
      %s386 = scalar_select %p385, %s382, 3
      %s387 = smul.addr %s384, 4
      %s388 = sadd.s32 %s386, %s387
      %s389 = smul.addr %s388, 4
      %s390 = scalar_lea.vmem %s8, %s389
      %s391 = smul.u32 4, %s25
      %s392 = smul.u32 4, %s25
      %p393 = scmp.lt.s32.totalorder %s26, 1
      %s394 = scalar_select %p393, %s26, 1
      %p395 = scmp.lt.s32.totalorder %s392, 3
      %s396 = scalar_select %p395, %s392, 3
      %s397 = smul.addr %s394, 4
      %s398 = sadd.s32 %s396, %s397
      %s399 = smul.addr %s398, 4
      %s400 = scalar_lea.vmem %s9, %s399
      %s401 = smul.u32 4, %s25
      %v402 = vld [vmem:[%s375] sm:$0x77]
      %v403 = vld [vmem:[%s375 + $0x8] sm:$0x77]
      %v404 = vld [vmem:[%s381] sm:$0xff]
      %v405 = vld [vmem:[%s381 + $0x8] sm:$0xff]
      %v406 = vld [vmem:[%s381 + $0x10] sm:$0xff]
      %v407 = vld [vmem:[%s381 + $0x18] sm:$0xff]
      %v408 = vld [vmem:[%s381 + $0x20] sm:$0xff]
      %v409 = vld [vmem:[%s381 + $0x28] sm:$0xff]
      %v410 = vld [vmem:[%s381 + $0x30] sm:$0xff]
      %v411 = vld [vmem:[%s381 + $0x38] sm:$0xff]
      %v412 = vld [vmem:[%s381 + $0x40] sm:$0xff]
      %v413 = vld [vmem:[%s381 + $0x48] sm:$0xff]
      %v414 = vld [vmem:[%s381 + $0x50] sm:$0xff]
      %v415 = vld [vmem:[%s381 + $0x58] sm:$0xff]
      %v416 = vld [vmem:[%s381 + $0x60] sm:$0xff]
      %v417 = vld [vmem:[%s381 + $0x68] sm:$0xff]
      %v418 = vld [vmem:[%s381 + $0x70] sm:$0xff]
      %v419 = vld [vmem:[%s381 + $0x78] sm:$0xff]
      %v420 = vld [vmem:[%s2] sm:$0xff]
      %v421 = vld [vmem:[%s2 + $0x8] sm:$0xff]
      %v422 = vld [vmem:[%s2 + $0x10] sm:$0xff]
      %v423 = vld [vmem:[%s2 + $0x18] sm:$0xff]
      %v424 = vld [vmem:[%s2 + $0x20] sm:$0xff]
      %v425 = vld [vmem:[%s2 + $0x28] sm:$0xff]
      %v426 = vld [vmem:[%s2 + $0x30] sm:$0xff]
      %v427 = vld [vmem:[%s2 + $0x38] sm:$0xff]
      %v428 = vld [vmem:[%s2 + $0x40] sm:$0xff]
      %v429 = vld [vmem:[%s2 + $0x48] sm:$0xff]
      %v430 = vld [vmem:[%s2 + $0x50] sm:$0xff]
      %v431 = vld [vmem:[%s2 + $0x58] sm:$0xff]
      %v432 = vld [vmem:[%s2 + $0x60] sm:$0xff]
      %v433 = vld [vmem:[%s2 + $0x68] sm:$0xff]
      %v434 = vld [vmem:[%s2 + $0x70] sm:$0xff]
      %v435 = vld [vmem:[%s2 + $0x78] sm:$0xff]
      %437 = vset.pattern.permute.xlu0 0
      %438 = vperm.xlu0 %437, %v420
      %v439 = vpop.permute.xlu0 %438
      %442 = vset.pattern.permute.xlu0 0
      %443 = vperm.xlu0 %442, %v421
      %v444 = vpop.permute.xlu0 %443
      %447 = vset.pattern.permute.xlu0 0
      %448 = vperm.xlu0 %447, %v422
      %v449 = vpop.permute.xlu0 %448
      %452 = vset.pattern.permute.xlu0 0
      %453 = vperm.xlu0 %452, %v423
      %v454 = vpop.permute.xlu0 %453
      %457 = vset.pattern.permute.xlu0 0
      %458 = vperm.xlu0 %457, %v424
      %v459 = vpop.permute.xlu0 %458
      %462 = vset.pattern.permute.xlu0 0
      %463 = vperm.xlu0 %462, %v425
      %v464 = vpop.permute.xlu0 %463
      %467 = vset.pattern.permute.xlu0 0
      %468 = vperm.xlu0 %467, %v426
      %v469 = vpop.permute.xlu0 %468
      %472 = vset.pattern.permute.xlu0 0
      %473 = vperm.xlu0 %472, %v427
      %v474 = vpop.permute.xlu0 %473
      %477 = vset.pattern.permute.xlu0 0
      %478 = vperm.xlu0 %477, %v428
      %v479 = vpop.permute.xlu0 %478
      %482 = vset.pattern.permute.xlu0 0
      %483 = vperm.xlu0 %482, %v429
      %v484 = vpop.permute.xlu0 %483
      %487 = vset.pattern.permute.xlu0 0
      %488 = vperm.xlu0 %487, %v430
      %v489 = vpop.permute.xlu0 %488
      %492 = vset.pattern.permute.xlu0 0
      %493 = vperm.xlu0 %492, %v431
      %v494 = vpop.permute.xlu0 %493
      %497 = vset.pattern.permute.xlu0 0
      %498 = vperm.xlu0 %497, %v432
      %v499 = vpop.permute.xlu0 %498
      %502 = vset.pattern.permute.xlu0 0
      %503 = vperm.xlu0 %502, %v433
      %v504 = vpop.permute.xlu0 %503
      %507 = vset.pattern.permute.xlu0 0
      %508 = vperm.xlu0 %507, %v434
      %v509 = vpop.permute.xlu0 %508
      %512 = vset.pattern.permute.xlu0 0
      %513 = vperm.xlu0 %512, %v435
      %v514 = vpop.permute.xlu0 %513
      %v518 = vperm.slane %v402, 0
      %v519 = vperm.slane %v402, 4
      %v520 = vperm.slane %v403, 0
      %v521 = vperm.slane %v403, 4
      %v526 = vperm.slane %v518, 0
      %v527 = vperm.slane %v519, 0
      %v528 = vperm.slane %v520, 0
      %v529 = vperm.slane %v521, 0
      %v530 = vmul.f32 %v439, %v526
      %v531 = vmul.f32 %v439, %v527
      %v532 = vmul.f32 %v439, %v528
      %v533 = vmul.f32 %v439, %v529
      %v534 = vmul.f32 %v444, %v526
      %v535 = vmul.f32 %v444, %v527
      %v536 = vmul.f32 %v444, %v528
      %v537 = vmul.f32 %v444, %v529
      %v538 = vmul.f32 %v449, %v526
      %v539 = vmul.f32 %v449, %v527
      %v540 = vmul.f32 %v449, %v528
      %v541 = vmul.f32 %v449, %v529
      %v542 = vmul.f32 %v454, %v526
      %v543 = vmul.f32 %v454, %v527
      %v544 = vmul.f32 %v454, %v528
      %v545 = vmul.f32 %v454, %v529
      %v546 = vmul.f32 %v459, %v526
      %v547 = vmul.f32 %v459, %v527
      %v548 = vmul.f32 %v459, %v528
      %v549 = vmul.f32 %v459, %v529
      %v550 = vmul.f32 %v464, %v526
      %v551 = vmul.f32 %v464, %v527
      %v552 = vmul.f32 %v464, %v528
      %v553 = vmul.f32 %v464, %v529
      %v554 = vmul.f32 %v469, %v526
      %v555 = vmul.f32 %v469, %v527
      %v556 = vmul.f32 %v469, %v528
      %v557 = vmul.f32 %v469, %v529
      %v558 = vmul.f32 %v474, %v526
      %v559 = vmul.f32 %v474, %v527
      %v560 = vmul.f32 %v474, %v528
      %v561 = vmul.f32 %v474, %v529
      %v562 = vmul.f32 %v479, %v526
      %v563 = vmul.f32 %v479, %v527
      %v564 = vmul.f32 %v479, %v528
      %v565 = vmul.f32 %v479, %v529
      %v566 = vmul.f32 %v484, %v526
      %v567 = vmul.f32 %v484, %v527
      %v568 = vmul.f32 %v484, %v528
      %v569 = vmul.f32 %v484, %v529
      %v570 = vmul.f32 %v489, %v526
      %v571 = vmul.f32 %v489, %v527
      %v572 = vmul.f32 %v489, %v528
      %v573 = vmul.f32 %v489, %v529
      %v574 = vmul.f32 %v494, %v526
      %v575 = vmul.f32 %v494, %v527
      %v576 = vmul.f32 %v494, %v528
      %v577 = vmul.f32 %v494, %v529
      %v578 = vmul.f32 %v499, %v526
      %v579 = vmul.f32 %v499, %v527
      %v580 = vmul.f32 %v499, %v528
      %v581 = vmul.f32 %v499, %v529
      %v582 = vmul.f32 %v504, %v526
      %v583 = vmul.f32 %v504, %v527
      %v584 = vmul.f32 %v504, %v528
      %v585 = vmul.f32 %v504, %v529
      %v586 = vmul.f32 %v509, %v526
      %v587 = vmul.f32 %v509, %v527
      %v588 = vmul.f32 %v509, %v528
      %v589 = vmul.f32 %v509, %v529
      %v590 = vmul.f32 %v514, %v526
      %v591 = vmul.f32 %v514, %v527
      %v592 = vmul.f32 %v514, %v528
      %v593 = vmul.f32 %v514, %v529
      %595 = vset.pattern.permute.xlu0 0
      %596 = vperm.xlu0 %595, %v404
      %v597 = vpop.permute.xlu0 %596
      %600 = vset.pattern.permute.xlu0 0
      %601 = vperm.xlu0 %600, %v405
      %v602 = vpop.permute.xlu0 %601
      %605 = vset.pattern.permute.xlu0 0
      %606 = vperm.xlu0 %605, %v406
      %v607 = vpop.permute.xlu0 %606
      %610 = vset.pattern.permute.xlu0 0
      %611 = vperm.xlu0 %610, %v407
      %v612 = vpop.permute.xlu0 %611
      %615 = vset.pattern.permute.xlu0 0
      %616 = vperm.xlu0 %615, %v408
      %v617 = vpop.permute.xlu0 %616
      %620 = vset.pattern.permute.xlu0 0
      %621 = vperm.xlu0 %620, %v409
      %v622 = vpop.permute.xlu0 %621
      %625 = vset.pattern.permute.xlu0 0
      %626 = vperm.xlu0 %625, %v410
      %v627 = vpop.permute.xlu0 %626
      %630 = vset.pattern.permute.xlu0 0
      %631 = vperm.xlu0 %630, %v411
      %v632 = vpop.permute.xlu0 %631
      %635 = vset.pattern.permute.xlu0 0
      %636 = vperm.xlu0 %635, %v412
      %v637 = vpop.permute.xlu0 %636
      %640 = vset.pattern.permute.xlu0 0
      %641 = vperm.xlu0 %640, %v413
      %v642 = vpop.permute.xlu0 %641
      %645 = vset.pattern.permute.xlu0 0
      %646 = vperm.xlu0 %645, %v414
      %v647 = vpop.permute.xlu0 %646
      %650 = vset.pattern.permute.xlu0 0
      %651 = vperm.xlu0 %650, %v415
      %v652 = vpop.permute.xlu0 %651
      %655 = vset.pattern.permute.xlu0 0
      %656 = vperm.xlu0 %655, %v416
      %v657 = vpop.permute.xlu0 %656
      %660 = vset.pattern.permute.xlu0 0
      %661 = vperm.xlu0 %660, %v417
      %v662 = vpop.permute.xlu0 %661
      %665 = vset.pattern.permute.xlu0 0
      %666 = vperm.xlu0 %665, %v418
      %v667 = vpop.permute.xlu0 %666
      %670 = vset.pattern.permute.xlu0 0
      %671 = vperm.xlu0 %670, %v419
      %v672 = vpop.permute.xlu0 %671
      %v674 = vadd.f32 %v597, %v530
      %v675 = vadd.f32 %v597, %v531
      %v676 = vadd.f32 %v597, %v532
      %v677 = vadd.f32 %v597, %v533
      %v678 = vadd.f32 %v602, %v534
      %v679 = vadd.f32 %v602, %v535
      %v680 = vadd.f32 %v602, %v536
      %v681 = vadd.f32 %v602, %v537
      %v682 = vadd.f32 %v607, %v538
      %v683 = vadd.f32 %v607, %v539
      %v684 = vadd.f32 %v607, %v540
      %v685 = vadd.f32 %v607, %v541
      %v686 = vadd.f32 %v612, %v542
      %v687 = vadd.f32 %v612, %v543
      %v688 = vadd.f32 %v612, %v544
      %v689 = vadd.f32 %v612, %v545
      %v690 = vadd.f32 %v617, %v546
      %v691 = vadd.f32 %v617, %v547
      %v692 = vadd.f32 %v617, %v548
      %v693 = vadd.f32 %v617, %v549
      %v694 = vadd.f32 %v622, %v550
      %v695 = vadd.f32 %v622, %v551
      %v696 = vadd.f32 %v622, %v552
      %v697 = vadd.f32 %v622, %v553
      %v698 = vadd.f32 %v627, %v554
      %v699 = vadd.f32 %v627, %v555
      %v700 = vadd.f32 %v627, %v556
      %v701 = vadd.f32 %v627, %v557
      %v702 = vadd.f32 %v632, %v558
      %v703 = vadd.f32 %v632, %v559
      %v704 = vadd.f32 %v632, %v560
      %v705 = vadd.f32 %v632, %v561
      %v706 = vadd.f32 %v637, %v562
      %v707 = vadd.f32 %v637, %v563
      %v708 = vadd.f32 %v637, %v564
      %v709 = vadd.f32 %v637, %v565
      %v710 = vadd.f32 %v642, %v566
      %v711 = vadd.f32 %v642, %v567
      %v712 = vadd.f32 %v642, %v568
      %v713 = vadd.f32 %v642, %v569
      %v714 = vadd.f32 %v647, %v570
      %v715 = vadd.f32 %v647, %v571
      %v716 = vadd.f32 %v647, %v572
      %v717 = vadd.f32 %v647, %v573
      %v718 = vadd.f32 %v652, %v574
      %v719 = vadd.f32 %v652, %v575
      %v720 = vadd.f32 %v652, %v576
      %v721 = vadd.f32 %v652, %v577
      %v722 = vadd.f32 %v657, %v578
      %v723 = vadd.f32 %v657, %v579
      %v724 = vadd.f32 %v657, %v580
      %v725 = vadd.f32 %v657, %v581
      %v726 = vadd.f32 %v662, %v582
      %v727 = vadd.f32 %v662, %v583
      %v728 = vadd.f32 %v662, %v584
      %v729 = vadd.f32 %v662, %v585
      %v730 = vadd.f32 %v667, %v586
      %v731 = vadd.f32 %v667, %v587
      %v732 = vadd.f32 %v667, %v588
      %v733 = vadd.f32 %v667, %v589
      %v734 = vadd.f32 %v672, %v590
      %v735 = vadd.f32 %v672, %v591
      %v736 = vadd.f32 %v672, %v592
      %v737 = vadd.f32 %v672, %v593
      %738 = vset.pattern.permute.xlu0 1
      %739 = vperm.xlu0 %738, %v420
      %v740 = vpop.permute.xlu0 %739
      %742 = vset.pattern.permute.xlu0 1
      %743 = vperm.xlu0 %742, %v421
      %v744 = vpop.permute.xlu0 %743
      %746 = vset.pattern.permute.xlu0 1
      %747 = vperm.xlu0 %746, %v422
      %v748 = vpop.permute.xlu0 %747
      %750 = vset.pattern.permute.xlu0 1
      %751 = vperm.xlu0 %750, %v423
      %v752 = vpop.permute.xlu0 %751
      %754 = vset.pattern.permute.xlu0 1
      %755 = vperm.xlu0 %754, %v424
      %v756 = vpop.permute.xlu0 %755
      %758 = vset.pattern.permute.xlu0 1
      %759 = vperm.xlu0 %758, %v425
      %v760 = vpop.permute.xlu0 %759
      %762 = vset.pattern.permute.xlu0 1
      %763 = vperm.xlu0 %762, %v426
      %v764 = vpop.permute.xlu0 %763
      %766 = vset.pattern.permute.xlu0 1
      %767 = vperm.xlu0 %766, %v427
      %v768 = vpop.permute.xlu0 %767
      %770 = vset.pattern.permute.xlu0 1
      %771 = vperm.xlu0 %770, %v428
      %v772 = vpop.permute.xlu0 %771
      %774 = vset.pattern.permute.xlu0 1
      %775 = vperm.xlu0 %774, %v429
      %v776 = vpop.permute.xlu0 %775
      %778 = vset.pattern.permute.xlu0 1
      %779 = vperm.xlu0 %778, %v430
      %v780 = vpop.permute.xlu0 %779
      %782 = vset.pattern.permute.xlu0 1
      %783 = vperm.xlu0 %782, %v431
      %v784 = vpop.permute.xlu0 %783
      %786 = vset.pattern.permute.xlu0 1
      %787 = vperm.xlu0 %786, %v432
      %v788 = vpop.permute.xlu0 %787
      %790 = vset.pattern.permute.xlu0 1
      %791 = vperm.xlu0 %790, %v433
      %v792 = vpop.permute.xlu0 %791
      %794 = vset.pattern.permute.xlu0 1
      %795 = vperm.xlu0 %794, %v434
      %v796 = vpop.permute.xlu0 %795
      %798 = vset.pattern.permute.xlu0 1
      %799 = vperm.xlu0 %798, %v435
      %v800 = vpop.permute.xlu0 %799
      %v802 = vperm.slane %v402, 1
      %v803 = vperm.slane %v402, 5
      %v804 = vperm.slane %v403, 1
      %v805 = vperm.slane %v403, 5
      %v810 = vperm.slane %v802, 1
      %v811 = vperm.slane %v803, 1
      %v812 = vperm.slane %v804, 1
      %v813 = vperm.slane %v805, 1
      %v814 = vmul.f32 %v740, %v810
      %v815 = vmul.f32 %v740, %v811
      %v816 = vmul.f32 %v740, %v812
      %v817 = vmul.f32 %v740, %v813
      %v818 = vmul.f32 %v744, %v810
      %v819 = vmul.f32 %v744, %v811
      %v820 = vmul.f32 %v744, %v812
      %v821 = vmul.f32 %v744, %v813
      %v822 = vmul.f32 %v748, %v810
      %v823 = vmul.f32 %v748, %v811
      %v824 = vmul.f32 %v748, %v812
      %v825 = vmul.f32 %v748, %v813
      %v826 = vmul.f32 %v752, %v810
      %v827 = vmul.f32 %v752, %v811
      %v828 = vmul.f32 %v752, %v812
      %v829 = vmul.f32 %v752, %v813
      %v830 = vmul.f32 %v756, %v810
      %v831 = vmul.f32 %v756, %v811
      %v832 = vmul.f32 %v756, %v812
      %v833 = vmul.f32 %v756, %v813
      %v834 = vmul.f32 %v760, %v810
      %v835 = vmul.f32 %v760, %v811
      %v836 = vmul.f32 %v760, %v812
      %v837 = vmul.f32 %v760, %v813
      %v838 = vmul.f32 %v764, %v810
      %v839 = vmul.f32 %v764, %v811
      %v840 = vmul.f32 %v764, %v812
      %v841 = vmul.f32 %v764, %v813
      %v842 = vmul.f32 %v768, %v810
      %v843 = vmul.f32 %v768, %v811
      %v844 = vmul.f32 %v768, %v812
      %v845 = vmul.f32 %v768, %v813
      %v846 = vmul.f32 %v772, %v810
      %v847 = vmul.f32 %v772, %v811
      %v848 = vmul.f32 %v772, %v812
      %v849 = vmul.f32 %v772, %v813
      %v850 = vmul.f32 %v776, %v810
      %v851 = vmul.f32 %v776, %v811
      %v852 = vmul.f32 %v776, %v812
      %v853 = vmul.f32 %v776, %v813
      %v854 = vmul.f32 %v780, %v810
      %v855 = vmul.f32 %v780, %v811
      %v856 = vmul.f32 %v780, %v812
      %v857 = vmul.f32 %v780, %v813
      %v858 = vmul.f32 %v784, %v810
      %v859 = vmul.f32 %v784, %v811
      %v860 = vmul.f32 %v784, %v812
      %v861 = vmul.f32 %v784, %v813
      %v862 = vmul.f32 %v788, %v810
      %v863 = vmul.f32 %v788, %v811
      %v864 = vmul.f32 %v788, %v812
      %v865 = vmul.f32 %v788, %v813
      %v866 = vmul.f32 %v792, %v810
      %v867 = vmul.f32 %v792, %v811
      %v868 = vmul.f32 %v792, %v812
      %v869 = vmul.f32 %v792, %v813
      %v870 = vmul.f32 %v796, %v810
      %v871 = vmul.f32 %v796, %v811
      %v872 = vmul.f32 %v796, %v812
      %v873 = vmul.f32 %v796, %v813
      %v874 = vmul.f32 %v800, %v810
      %v875 = vmul.f32 %v800, %v811
      %v876 = vmul.f32 %v800, %v812
      %v877 = vmul.f32 %v800, %v813
      %v878 = vadd.f32 %v674, %v814
      %v879 = vadd.f32 %v675, %v815
      %v880 = vadd.f32 %v676, %v816
      %v881 = vadd.f32 %v677, %v817
      %v882 = vadd.f32 %v678, %v818
      %v883 = vadd.f32 %v679, %v819
      %v884 = vadd.f32 %v680, %v820
      %v885 = vadd.f32 %v681, %v821
      %v886 = vadd.f32 %v682, %v822
      %v887 = vadd.f32 %v683, %v823
      %v888 = vadd.f32 %v684, %v824
      %v889 = vadd.f32 %v685, %v825
      %v890 = vadd.f32 %v686, %v826
      %v891 = vadd.f32 %v687, %v827
      %v892 = vadd.f32 %v688, %v828
      %v893 = vadd.f32 %v689, %v829
      %v894 = vadd.f32 %v690, %v830
      %v895 = vadd.f32 %v691, %v831
      %v896 = vadd.f32 %v692, %v832
      %v897 = vadd.f32 %v693, %v833
      %v898 = vadd.f32 %v694, %v834
      %v899 = vadd.f32 %v695, %v835
      %v900 = vadd.f32 %v696, %v836
      %v901 = vadd.f32 %v697, %v837
      %v902 = vadd.f32 %v698, %v838
      %v903 = vadd.f32 %v699, %v839
      %v904 = vadd.f32 %v700, %v840
      %v905 = vadd.f32 %v701, %v841
      %v906 = vadd.f32 %v702, %v842
      %v907 = vadd.f32 %v703, %v843
      %v908 = vadd.f32 %v704, %v844
      %v909 = vadd.f32 %v705, %v845
      %v910 = vadd.f32 %v706, %v846
      %v911 = vadd.f32 %v707, %v847
      %v912 = vadd.f32 %v708, %v848
      %v913 = vadd.f32 %v709, %v849
      %v914 = vadd.f32 %v710, %v850
      %v915 = vadd.f32 %v711, %v851
      %v916 = vadd.f32 %v712, %v852
      %v917 = vadd.f32 %v713, %v853
      %v918 = vadd.f32 %v714, %v854
      %v919 = vadd.f32 %v715, %v855
      %v920 = vadd.f32 %v716, %v856
      %v921 = vadd.f32 %v717, %v857
      %v922 = vadd.f32 %v718, %v858
      %v923 = vadd.f32 %v719, %v859
      %v924 = vadd.f32 %v720, %v860
      %v925 = vadd.f32 %v721, %v861
      %v926 = vadd.f32 %v722, %v862
      %v927 = vadd.f32 %v723, %v863
      %v928 = vadd.f32 %v724, %v864
      %v929 = vadd.f32 %v725, %v865
      %v930 = vadd.f32 %v726, %v866
      %v931 = vadd.f32 %v727, %v867
      %v932 = vadd.f32 %v728, %v868
      %v933 = vadd.f32 %v729, %v869
      %v934 = vadd.f32 %v730, %v870
      %v935 = vadd.f32 %v731, %v871
      %v936 = vadd.f32 %v732, %v872
      %v937 = vadd.f32 %v733, %v873
      %v938 = vadd.f32 %v734, %v874
      %v939 = vadd.f32 %v735, %v875
      %v940 = vadd.f32 %v736, %v876
      %v941 = vadd.f32 %v737, %v877
      %942 = vset.pattern.permute.xlu0 2
      %943 = vperm.xlu0 %942, %v420
      %v944 = vpop.permute.xlu0 %943
      %946 = vset.pattern.permute.xlu0 2
      %947 = vperm.xlu0 %946, %v421
      %v948 = vpop.permute.xlu0 %947
      %950 = vset.pattern.permute.xlu0 2
      %951 = vperm.xlu0 %950, %v422
      %v952 = vpop.permute.xlu0 %951
      %954 = vset.pattern.permute.xlu0 2
      %955 = vperm.xlu0 %954, %v423
      %v956 = vpop.permute.xlu0 %955
      %958 = vset.pattern.permute.xlu0 2
      %959 = vperm.xlu0 %958, %v424
      %v960 = vpop.permute.xlu0 %959
      %962 = vset.pattern.permute.xlu0 2
      %963 = vperm.xlu0 %962, %v425
      %v964 = vpop.permute.xlu0 %963
      %966 = vset.pattern.permute.xlu0 2
      %967 = vperm.xlu0 %966, %v426
      %v968 = vpop.permute.xlu0 %967
      %970 = vset.pattern.permute.xlu0 2
      %971 = vperm.xlu0 %970, %v427
      %v972 = vpop.permute.xlu0 %971
      %974 = vset.pattern.permute.xlu0 2
      %975 = vperm.xlu0 %974, %v428
      %v976 = vpop.permute.xlu0 %975
      %978 = vset.pattern.permute.xlu0 2
      %979 = vperm.xlu0 %978, %v429
      %v980 = vpop.permute.xlu0 %979
      %982 = vset.pattern.permute.xlu0 2
      %983 = vperm.xlu0 %982, %v430
      %v984 = vpop.permute.xlu0 %983
      %986 = vset.pattern.permute.xlu0 2
      %987 = vperm.xlu0 %986, %v431
      %v988 = vpop.permute.xlu0 %987
      %990 = vset.pattern.permute.xlu0 2
      %991 = vperm.xlu0 %990, %v432
      %v992 = vpop.permute.xlu0 %991
      %994 = vset.pattern.permute.xlu0 2
      %995 = vperm.xlu0 %994, %v433
      %v996 = vpop.permute.xlu0 %995
      %998 = vset.pattern.permute.xlu0 2
      %999 = vperm.xlu0 %998, %v434
      %v1000 = vpop.permute.xlu0 %999
      %1002 = vset.pattern.permute.xlu0 2
      %1003 = vperm.xlu0 %1002, %v435
      %v1004 = vpop.permute.xlu0 %1003
      %v1006 = vperm.slane %v402, 2
      %v1007 = vperm.slane %v402, 6
      %v1008 = vperm.slane %v403, 2
      %v1009 = vperm.slane %v403, 6
      %v1014 = vperm.slane %v1006, 2
      %v1015 = vperm.slane %v1007, 2
      %v1016 = vperm.slane %v1008, 2
      %v1017 = vperm.slane %v1009, 2
      %v1018 = vmul.f32 %v944, %v1014
      %v1019 = vmul.f32 %v944, %v1015
      %v1020 = vmul.f32 %v944, %v1016
      %v1021 = vmul.f32 %v944, %v1017
      %v1022 = vmul.f32 %v948, %v1014
      %v1023 = vmul.f32 %v948, %v1015
      %v1024 = vmul.f32 %v948, %v1016
      %v1025 = vmul.f32 %v948, %v1017
      %v1026 = vmul.f32 %v952, %v1014
      %v1027 = vmul.f32 %v952, %v1015
      %v1028 = vmul.f32 %v952, %v1016
      %v1029 = vmul.f32 %v952, %v1017
      %v1030 = vmul.f32 %v956, %v1014
      %v1031 = vmul.f32 %v956, %v1015
      %v1032 = vmul.f32 %v956, %v1016
      %v1033 = vmul.f32 %v956, %v1017
      %v1034 = vmul.f32 %v960, %v1014
      %v1035 = vmul.f32 %v960, %v1015
      %v1036 = vmul.f32 %v960, %v1016
      %v1037 = vmul.f32 %v960, %v1017
      %v1038 = vmul.f32 %v964, %v1014
      %v1039 = vmul.f32 %v964, %v1015
      %v1040 = vmul.f32 %v964, %v1016
      %v1041 = vmul.f32 %v964, %v1017
      %v1042 = vmul.f32 %v968, %v1014
      %v1043 = vmul.f32 %v968, %v1015
      %v1044 = vmul.f32 %v968, %v1016
      %v1045 = vmul.f32 %v968, %v1017
      %v1046 = vmul.f32 %v972, %v1014
      %v1047 = vmul.f32 %v972, %v1015
      %v1048 = vmul.f32 %v972, %v1016
      %v1049 = vmul.f32 %v972, %v1017
      %v1050 = vmul.f32 %v976, %v1014
      %v1051 = vmul.f32 %v976, %v1015
      %v1052 = vmul.f32 %v976, %v1016
      %v1053 = vmul.f32 %v976, %v1017
      %v1054 = vmul.f32 %v980, %v1014
      %v1055 = vmul.f32 %v980, %v1015
      %v1056 = vmul.f32 %v980, %v1016
      %v1057 = vmul.f32 %v980, %v1017
      %v1058 = vmul.f32 %v984, %v1014
      %v1059 = vmul.f32 %v984, %v1015
      %v1060 = vmul.f32 %v984, %v1016
      %v1061 = vmul.f32 %v984, %v1017
      %v1062 = vmul.f32 %v988, %v1014
      %v1063 = vmul.f32 %v988, %v1015
      %v1064 = vmul.f32 %v988, %v1016
      %v1065 = vmul.f32 %v988, %v1017
      %v1066 = vmul.f32 %v992, %v1014
      %v1067 = vmul.f32 %v992, %v1015
      %v1068 = vmul.f32 %v992, %v1016
      %v1069 = vmul.f32 %v992, %v1017
      %v1070 = vmul.f32 %v996, %v1014
      %v1071 = vmul.f32 %v996, %v1015
      %v1072 = vmul.f32 %v996, %v1016
      %v1073 = vmul.f32 %v996, %v1017
      %v1074 = vmul.f32 %v1000, %v1014
      %v1075 = vmul.f32 %v1000, %v1015
      %v1076 = vmul.f32 %v1000, %v1016
      %v1077 = vmul.f32 %v1000, %v1017
      %v1078 = vmul.f32 %v1004, %v1014
      %v1079 = vmul.f32 %v1004, %v1015
      %v1080 = vmul.f32 %v1004, %v1016
      %v1081 = vmul.f32 %v1004, %v1017
      %v1082 = vadd.f32 %v878, %v1018
      %v1083 = vadd.f32 %v879, %v1019
      %v1084 = vadd.f32 %v880, %v1020
      %v1085 = vadd.f32 %v881, %v1021
      %v1086 = vadd.f32 %v882, %v1022
      %v1087 = vadd.f32 %v883, %v1023
      %v1088 = vadd.f32 %v884, %v1024
      %v1089 = vadd.f32 %v885, %v1025
      %v1090 = vadd.f32 %v886, %v1026
      %v1091 = vadd.f32 %v887, %v1027
      %v1092 = vadd.f32 %v888, %v1028
      %v1093 = vadd.f32 %v889, %v1029
      %v1094 = vadd.f32 %v890, %v1030
      %v1095 = vadd.f32 %v891, %v1031
      %v1096 = vadd.f32 %v892, %v1032
      %v1097 = vadd.f32 %v893, %v1033
      %v1098 = vadd.f32 %v894, %v1034
      %v1099 = vadd.f32 %v895, %v1035
      %v1100 = vadd.f32 %v896, %v1036
      %v1101 = vadd.f32 %v897, %v1037
      %v1102 = vadd.f32 %v898, %v1038
      %v1103 = vadd.f32 %v899, %v1039
      %v1104 = vadd.f32 %v900, %v1040
      %v1105 = vadd.f32 %v901, %v1041
      %v1106 = vadd.f32 %v902, %v1042
      %v1107 = vadd.f32 %v903, %v1043
      %v1108 = vadd.f32 %v904, %v1044
      %v1109 = vadd.f32 %v905, %v1045
      %v1110 = vadd.f32 %v906, %v1046
      %v1111 = vadd.f32 %v907, %v1047
      %v1112 = vadd.f32 %v908, %v1048
      %v1113 = vadd.f32 %v909, %v1049
      %v1114 = vadd.f32 %v910, %v1050
      %v1115 = vadd.f32 %v911, %v1051
      %v1116 = vadd.f32 %v912, %v1052
      %v1117 = vadd.f32 %v913, %v1053
      %v1118 = vadd.f32 %v914, %v1054
      %v1119 = vadd.f32 %v915, %v1055
      %v1120 = vadd.f32 %v916, %v1056
      %v1121 = vadd.f32 %v917, %v1057
      %v1122 = vadd.f32 %v918, %v1058
      %v1123 = vadd.f32 %v919, %v1059
      %v1124 = vadd.f32 %v920, %v1060
      %v1125 = vadd.f32 %v921, %v1061
      %v1126 = vadd.f32 %v922, %v1062
      %v1127 = vadd.f32 %v923, %v1063
      %v1128 = vadd.f32 %v924, %v1064
      %v1129 = vadd.f32 %v925, %v1065
      %v1130 = vadd.f32 %v926, %v1066
      %v1131 = vadd.f32 %v927, %v1067
      %v1132 = vadd.f32 %v928, %v1068
      %v1133 = vadd.f32 %v929, %v1069
      %v1134 = vadd.f32 %v930, %v1070
      %v1135 = vadd.f32 %v931, %v1071
      %v1136 = vadd.f32 %v932, %v1072
      %v1137 = vadd.f32 %v933, %v1073
      %v1138 = vadd.f32 %v934, %v1074
      %v1139 = vadd.f32 %v935, %v1075
      %v1140 = vadd.f32 %v936, %v1076
      %v1141 = vadd.f32 %v937, %v1077
      %v1142 = vadd.f32 %v938, %v1078
      %v1143 = vadd.f32 %v939, %v1079
      %v1144 = vadd.f32 %v940, %v1080
      %v1145 = vadd.f32 %v941, %v1081
      %v1146 = vmax.f32 %v1082, 0.0
      %v1147 = vmax.f32 %v1083, 0.0
      %v1148 = vmax.f32 %v1084, 0.0
      %v1149 = vmax.f32 %v1085, 0.0
      %v1150 = vmax.f32 %v1086, 0.0
      %v1151 = vmax.f32 %v1087, 0.0
      %v1152 = vmax.f32 %v1088, 0.0
      %v1153 = vmax.f32 %v1089, 0.0
      %v1154 = vmax.f32 %v1090, 0.0
      %v1155 = vmax.f32 %v1091, 0.0
      %v1156 = vmax.f32 %v1092, 0.0
      %v1157 = vmax.f32 %v1093, 0.0
      %v1158 = vmax.f32 %v1094, 0.0
      %v1159 = vmax.f32 %v1095, 0.0
      %v1160 = vmax.f32 %v1096, 0.0
      %v1161 = vmax.f32 %v1097, 0.0
      %v1162 = vmax.f32 %v1098, 0.0
      %v1163 = vmax.f32 %v1099, 0.0
      %v1164 = vmax.f32 %v1100, 0.0
      %v1165 = vmax.f32 %v1101, 0.0
      %v1166 = vmax.f32 %v1102, 0.0
      %v1167 = vmax.f32 %v1103, 0.0
      %v1168 = vmax.f32 %v1104, 0.0
      %v1169 = vmax.f32 %v1105, 0.0
      %v1170 = vmax.f32 %v1106, 0.0
      %v1171 = vmax.f32 %v1107, 0.0
      %v1172 = vmax.f32 %v1108, 0.0
      %v1173 = vmax.f32 %v1109, 0.0
      %v1174 = vmax.f32 %v1110, 0.0
      %v1175 = vmax.f32 %v1111, 0.0
      %v1176 = vmax.f32 %v1112, 0.0
      %v1177 = vmax.f32 %v1113, 0.0
      %v1178 = vmax.f32 %v1114, 0.0
      %v1179 = vmax.f32 %v1115, 0.0
      %v1180 = vmax.f32 %v1116, 0.0
      %v1181 = vmax.f32 %v1117, 0.0
      %v1182 = vmax.f32 %v1118, 0.0
      %v1183 = vmax.f32 %v1119, 0.0
      %v1184 = vmax.f32 %v1120, 0.0
      %v1185 = vmax.f32 %v1121, 0.0
      %v1186 = vmax.f32 %v1122, 0.0
      %v1187 = vmax.f32 %v1123, 0.0
      %v1188 = vmax.f32 %v1124, 0.0
      %v1189 = vmax.f32 %v1125, 0.0
      %v1190 = vmax.f32 %v1126, 0.0
      %v1191 = vmax.f32 %v1127, 0.0
      %v1192 = vmax.f32 %v1128, 0.0
      %v1193 = vmax.f32 %v1129, 0.0
      %v1194 = vmax.f32 %v1130, 0.0
      %v1195 = vmax.f32 %v1131, 0.0
      %v1196 = vmax.f32 %v1132, 0.0
      %v1197 = vmax.f32 %v1133, 0.0
      %v1198 = vmax.f32 %v1134, 0.0
      %v1199 = vmax.f32 %v1135, 0.0
      %v1200 = vmax.f32 %v1136, 0.0
      %v1201 = vmax.f32 %v1137, 0.0
      %v1202 = vmax.f32 %v1138, 0.0
      %v1203 = vmax.f32 %v1139, 0.0
      %v1204 = vmax.f32 %v1140, 0.0
      %v1205 = vmax.f32 %v1141, 0.0
      %v1206 = vmax.f32 %v1142, 0.0
      %v1207 = vmax.f32 %v1143, 0.0
      %v1208 = vmax.f32 %v1144, 0.0
      %v1209 = vmax.f32 %v1145, 0.0
      %v1210 = vpack.c.bf16 %v1150, %v1146
      %v1211 = vpack.c.bf16 %v1151, %v1147
      %v1212 = vpack.c.bf16 %v1152, %v1148
      %v1213 = vpack.c.bf16 %v1153, %v1149
      %v1214 = vpack.c.bf16 %v1158, %v1154
      %v1215 = vpack.c.bf16 %v1159, %v1155
      %v1216 = vpack.c.bf16 %v1160, %v1156
      %v1217 = vpack.c.bf16 %v1161, %v1157
      %v1218 = vpack.c.bf16 %v1166, %v1162
      %v1219 = vpack.c.bf16 %v1167, %v1163
      %v1220 = vpack.c.bf16 %v1168, %v1164
      %v1221 = vpack.c.bf16 %v1169, %v1165
      %v1222 = vpack.c.bf16 %v1174, %v1170
      %v1223 = vpack.c.bf16 %v1175, %v1171
      %v1224 = vpack.c.bf16 %v1176, %v1172
      %v1225 = vpack.c.bf16 %v1177, %v1173
      %v1226 = vpack.c.bf16 %v1182, %v1178
      %v1227 = vpack.c.bf16 %v1183, %v1179
      %v1228 = vpack.c.bf16 %v1184, %v1180
      %v1229 = vpack.c.bf16 %v1185, %v1181
      %v1230 = vpack.c.bf16 %v1190, %v1186
      %v1231 = vpack.c.bf16 %v1191, %v1187
      %v1232 = vpack.c.bf16 %v1192, %v1188
      %v1233 = vpack.c.bf16 %v1193, %v1189
      %v1234 = vpack.c.bf16 %v1198, %v1194
      %v1235 = vpack.c.bf16 %v1199, %v1195
      %v1236 = vpack.c.bf16 %v1200, %v1196
      %v1237 = vpack.c.bf16 %v1201, %v1197
      %v1238 = vpack.c.bf16 %v1206, %v1202
      %v1239 = vpack.c.bf16 %v1207, %v1203
      %v1240 = vpack.c.bf16 %v1208, %v1204
      %v1241 = vpack.c.bf16 %v1209, %v1205
      %v1242 = vld [vmem:[%s3] sm:$0xf]
      %v1243 = vld [vmem:[%s3 + $0x4] sm:$0xf]
      %v1244 = vld [vmem:[%s3 + $0x8] sm:$0xf]
      %v1245 = vld [vmem:[%s3 + $0xc] sm:$0xf]
      %v1246 = vld [vmem:[%s3 + $0x10] sm:$0xf]
      %v1247 = vld [vmem:[%s3 + $0x14] sm:$0xf]
      %v1248 = vld [vmem:[%s3 + $0x18] sm:$0xf]
      %v1249 = vld [vmem:[%s3 + $0x1c] sm:$0xf]
      %v1250 = vld [vmem:[%s3 + $0x20] sm:$0xf]
      %v1251 = vld [vmem:[%s3 + $0x24] sm:$0xf]
      %v1252 = vld [vmem:[%s3 + $0x28] sm:$0xf]
      %v1253 = vld [vmem:[%s3 + $0x2c] sm:$0xf]
      %v1254 = vld [vmem:[%s3 + $0x30] sm:$0xf]
      %v1255 = vld [vmem:[%s3 + $0x34] sm:$0xf]
      %v1256 = vld [vmem:[%s3 + $0x38] sm:$0xf]
      %v1257 = vld [vmem:[%s3 + $0x3c] sm:$0xf]
      %v1274 = vunpack.c.l.b16 %v1242
      %v1275 = vunpack.c.l.b16 %v1243
      %v1276 = vunpack.c.l.b16 %v1244
      %v1277 = vunpack.c.l.b16 %v1245
      %v1278 = vunpack.c.l.b16 %v1246
      %v1279 = vunpack.c.l.b16 %v1247
      %v1280 = vunpack.c.l.b16 %v1248
      %v1281 = vunpack.c.l.b16 %v1249
      %v1282 = vunpack.c.l.b16 %v1250
      %v1283 = vunpack.c.l.b16 %v1251
      %v1284 = vunpack.c.l.b16 %v1252
      %v1285 = vunpack.c.l.b16 %v1253
      %v1286 = vunpack.c.l.b16 %v1254
      %v1287 = vunpack.c.l.b16 %v1255
      %v1288 = vunpack.c.l.b16 %v1256
      %v1289 = vunpack.c.l.b16 %v1257
      %v1290 = vpack.c.b16 %v1275, %v1274
      %v1291 = vpack.c.b16 %v1277, %v1276
      %v1292 = vpack.c.b16 %v1279, %v1278
      %v1293 = vpack.c.b16 %v1281, %v1280
      %v1294 = vpack.c.b16 %v1283, %v1282
      %v1295 = vpack.c.b16 %v1285, %v1284
      %v1296 = vpack.c.b16 %v1287, %v1286
      %v1297 = vpack.c.b16 %v1289, %v1288
      %1306 = vmatpush.bf16.msra.mxu0 %v1238
      %1307 = vmatpush.bf16.msra.mxu0 %v1234
      %1308 = vmatpush.bf16.msra.mxu0 %v1230
      %1309 = vmatpush.bf16.msra.mxu0 %v1226
      %1310 = vmatpush.bf16.msra.mxu0 %v1222
      %1311 = vmatpush.bf16.msra.mxu0 %v1218
      %1312 = vmatpush.bf16.msra.mxu0 %v1214
      %1313 = vmatpush.bf16.msra.mxu0 %v1210
      %1314 = vmatmul.bf16.gmra.mxu0 %v1290
      %v1315 = vpop.f32.mrf.mxu0
      %v1316 = vadd.f32 0.0, %v1315
      %v1317 = vpop.f32.mrf.mxu0
      %v1318 = vadd.f32 0.0, %v1317
      %1319 = vmatmul.bf16.gmra.mxu0 %v1291
      %v1320 = vpop.f32.mrf.mxu0
      %v1321 = vadd.f32 0.0, %v1320
      %v1322 = vpop.f32.mrf.mxu0
      %v1323 = vadd.f32 0.0, %v1322
      %1324 = vmatmul.bf16.gmra.mxu0 %v1292
      %v1325 = vpop.f32.mrf.mxu0
      %v1326 = vadd.f32 0.0, %v1325
      %v1327 = vpop.f32.mrf.mxu0
      %v1328 = vadd.f32 0.0, %v1327
      %1329 = vmatmul.bf16.gmra.mxu0 %v1293
      %v1330 = vpop.f32.mrf.mxu0
      %v1331 = vadd.f32 0.0, %v1330
      %v1332 = vpop.f32.mrf.mxu0
      %v1333 = vadd.f32 0.0, %v1332
      %1334 = vmatmul.bf16.gmra.mxu0 %v1294
      %v1335 = vpop.f32.mrf.mxu0
      %v1336 = vadd.f32 0.0, %v1335
      %v1337 = vpop.f32.mrf.mxu0
      %v1338 = vadd.f32 0.0, %v1337
      %1339 = vmatmul.bf16.gmra.mxu0 %v1295
      %v1340 = vpop.f32.mrf.mxu0
      %v1341 = vadd.f32 0.0, %v1340
      %v1342 = vpop.f32.mrf.mxu0
      %v1343 = vadd.f32 0.0, %v1342
      %1344 = vmatmul.bf16.gmra.mxu0 %v1296
      %v1345 = vpop.f32.mrf.mxu0
      %v1346 = vadd.f32 0.0, %v1345
      %v1347 = vpop.f32.mrf.mxu0
      %v1348 = vadd.f32 0.0, %v1347
      %1349 = vmatmul.bf16.gmra.mxu0 %v1297
      %v1350 = vpop.f32.mrf.mxu0
      %v1351 = vadd.f32 0.0, %v1350
      %v1352 = vpop.f32.mrf.mxu0
      %v1353 = vadd.f32 0.0, %v1352
      %1354 = vdwg.mxu0
      %1355 = vmatpush.bf16.msra.mxu0 %v1239
      %1356 = vmatpush.bf16.msra.mxu0 %v1235
      %1357 = vmatpush.bf16.msra.mxu0 %v1231
      %1358 = vmatpush.bf16.msra.mxu0 %v1227
      %1359 = vmatpush.bf16.msra.mxu0 %v1223
      %1360 = vmatpush.bf16.msra.mxu0 %v1219
      %1361 = vmatpush.bf16.msra.mxu0 %v1215
      %1362 = vmatpush.bf16.msra.mxu0 %v1211
      %1363 = vmatmul.bf16.gmra.mxu0 %v1290
      %v1364 = vpop.f32.mrf.mxu0
      %v1365 = vadd.f32 0.0, %v1364
      %v1366 = vpop.f32.mrf.mxu0
      %v1367 = vadd.f32 0.0, %v1366
      %1368 = vmatmul.bf16.gmra.mxu0 %v1291
      %v1369 = vpop.f32.mrf.mxu0
      %v1370 = vadd.f32 0.0, %v1369
      %v1371 = vpop.f32.mrf.mxu0
      %v1372 = vadd.f32 0.0, %v1371
      %1373 = vmatmul.bf16.gmra.mxu0 %v1292
      %v1374 = vpop.f32.mrf.mxu0
      %v1375 = vadd.f32 0.0, %v1374
      %v1376 = vpop.f32.mrf.mxu0
      %v1377 = vadd.f32 0.0, %v1376
      %1378 = vmatmul.bf16.gmra.mxu0 %v1293
      %v1379 = vpop.f32.mrf.mxu0
      %v1380 = vadd.f32 0.0, %v1379
      %v1381 = vpop.f32.mrf.mxu0
      %v1382 = vadd.f32 0.0, %v1381
      %1383 = vmatmul.bf16.gmra.mxu0 %v1294
      %v1384 = vpop.f32.mrf.mxu0
      %v1385 = vadd.f32 0.0, %v1384
      %v1386 = vpop.f32.mrf.mxu0
      %v1387 = vadd.f32 0.0, %v1386
      %1388 = vmatmul.bf16.gmra.mxu0 %v1295
      %v1389 = vpop.f32.mrf.mxu0
      %v1390 = vadd.f32 0.0, %v1389
      %v1391 = vpop.f32.mrf.mxu0
      %v1392 = vadd.f32 0.0, %v1391
      %1393 = vmatmul.bf16.gmra.mxu0 %v1296
      %v1394 = vpop.f32.mrf.mxu0
      %v1395 = vadd.f32 0.0, %v1394
      %v1396 = vpop.f32.mrf.mxu0
      %v1397 = vadd.f32 0.0, %v1396
      %1398 = vmatmul.bf16.gmra.mxu0 %v1297
      %v1399 = vpop.f32.mrf.mxu0
      %v1400 = vadd.f32 0.0, %v1399
      %v1401 = vpop.f32.mrf.mxu0
      %v1402 = vadd.f32 0.0, %v1401
      %1403 = vdwg.mxu0
      %1404 = vmatpush.bf16.msra.mxu0 %v1240
      %1405 = vmatpush.bf16.msra.mxu0 %v1236
      %1406 = vmatpush.bf16.msra.mxu0 %v1232
      %1407 = vmatpush.bf16.msra.mxu0 %v1228
      %1408 = vmatpush.bf16.msra.mxu0 %v1224
      %1409 = vmatpush.bf16.msra.mxu0 %v1220
      %1410 = vmatpush.bf16.msra.mxu0 %v1216
      %1411 = vmatpush.bf16.msra.mxu0 %v1212
      %1412 = vmatmul.bf16.gmra.mxu0 %v1290
      %v1413 = vpop.f32.mrf.mxu0
      %v1414 = vadd.f32 0.0, %v1413
      %v1415 = vpop.f32.mrf.mxu0
      %v1416 = vadd.f32 0.0, %v1415
      %1417 = vmatmul.bf16.gmra.mxu0 %v1291
      %v1418 = vpop.f32.mrf.mxu0
      %v1419 = vadd.f32 0.0, %v1418
      %v1420 = vpop.f32.mrf.mxu0
      %v1421 = vadd.f32 0.0, %v1420
      %1422 = vmatmul.bf16.gmra.mxu0 %v1292
      %v1423 = vpop.f32.mrf.mxu0
      %v1424 = vadd.f32 0.0, %v1423
      %v1425 = vpop.f32.mrf.mxu0
      %v1426 = vadd.f32 0.0, %v1425
      %1427 = vmatmul.bf16.gmra.mxu0 %v1293
      %v1428 = vpop.f32.mrf.mxu0
      %v1429 = vadd.f32 0.0, %v1428
      %v1430 = vpop.f32.mrf.mxu0
      %v1431 = vadd.f32 0.0, %v1430
      %1432 = vmatmul.bf16.gmra.mxu0 %v1294
      %v1433 = vpop.f32.mrf.mxu0
      %v1434 = vadd.f32 0.0, %v1433
      %v1435 = vpop.f32.mrf.mxu0
      %v1436 = vadd.f32 0.0, %v1435
      %1437 = vmatmul.bf16.gmra.mxu0 %v1295
      %v1438 = vpop.f32.mrf.mxu0
      %v1439 = vadd.f32 0.0, %v1438
      %v1440 = vpop.f32.mrf.mxu0
      %v1441 = vadd.f32 0.0, %v1440
      %1442 = vmatmul.bf16.gmra.mxu0 %v1296
      %v1443 = vpop.f32.mrf.mxu0
      %v1444 = vadd.f32 0.0, %v1443
      %v1445 = vpop.f32.mrf.mxu0
      %v1446 = vadd.f32 0.0, %v1445
      %1447 = vmatmul.bf16.gmra.mxu0 %v1297
      %v1448 = vpop.f32.mrf.mxu0
      %v1449 = vadd.f32 0.0, %v1448
      %v1450 = vpop.f32.mrf.mxu0
      %v1451 = vadd.f32 0.0, %v1450
      %1452 = vdwg.mxu0
      %1453 = vmatpush.bf16.msra.mxu0 %v1241
      %1454 = vmatpush.bf16.msra.mxu0 %v1237
      %1455 = vmatpush.bf16.msra.mxu0 %v1233
      %1456 = vmatpush.bf16.msra.mxu0 %v1229
      %1457 = vmatpush.bf16.msra.mxu0 %v1225
      %1458 = vmatpush.bf16.msra.mxu0 %v1221
      %1459 = vmatpush.bf16.msra.mxu0 %v1217
      %1460 = vmatpush.bf16.msra.mxu0 %v1213
      %1461 = vmatmul.bf16.gmra.mxu0 %v1290
      %v1462 = vpop.f32.mrf.mxu0
      %v1463 = vadd.f32 0.0, %v1462
      %v1464 = vpop.f32.mrf.mxu0
      %v1465 = vadd.f32 0.0, %v1464
      %1466 = vmatmul.bf16.gmra.mxu0 %v1291
      %v1467 = vpop.f32.mrf.mxu0
      %v1468 = vadd.f32 0.0, %v1467
      %v1469 = vpop.f32.mrf.mxu0
      %v1470 = vadd.f32 0.0, %v1469
      %1471 = vmatmul.bf16.gmra.mxu0 %v1292
      %v1472 = vpop.f32.mrf.mxu0
      %v1473 = vadd.f32 0.0, %v1472
      %v1474 = vpop.f32.mrf.mxu0
      %v1475 = vadd.f32 0.0, %v1474
      %1476 = vmatmul.bf16.gmra.mxu0 %v1293
      %v1477 = vpop.f32.mrf.mxu0
      %v1478 = vadd.f32 0.0, %v1477
      %v1479 = vpop.f32.mrf.mxu0
      %v1480 = vadd.f32 0.0, %v1479
      %1481 = vmatmul.bf16.gmra.mxu0 %v1294
      %v1482 = vpop.f32.mrf.mxu0
      %v1483 = vadd.f32 0.0, %v1482
      %v1484 = vpop.f32.mrf.mxu0
      %v1485 = vadd.f32 0.0, %v1484
      %1486 = vmatmul.bf16.gmra.mxu0 %v1295
      %v1487 = vpop.f32.mrf.mxu0
      %v1488 = vadd.f32 0.0, %v1487
      %v1489 = vpop.f32.mrf.mxu0
      %v1490 = vadd.f32 0.0, %v1489
      %1491 = vmatmul.bf16.gmra.mxu0 %v1296
      %v1492 = vpop.f32.mrf.mxu0
      %v1493 = vadd.f32 0.0, %v1492
      %v1494 = vpop.f32.mrf.mxu0
      %v1495 = vadd.f32 0.0, %v1494
      %1496 = vmatmul.bf16.gmra.mxu0 %v1297
      %v1497 = vpop.f32.mrf.mxu0
      %v1498 = vadd.f32 0.0, %v1497
      %v1499 = vpop.f32.mrf.mxu0
      %v1500 = vadd.f32 0.0, %v1499
      %1501 = vdwg.mxu0
      %v1502 = vmax.f32 %v1316, 0.0
      %v1503 = vmax.f32 %v1365, 0.0
      %v1504 = vmax.f32 %v1414, 0.0
      %v1505 = vmax.f32 %v1463, 0.0
      %v1506 = vmax.f32 %v1318, 0.0
      %v1507 = vmax.f32 %v1367, 0.0
      %v1508 = vmax.f32 %v1416, 0.0
      %v1509 = vmax.f32 %v1465, 0.0
      %v1510 = vmax.f32 %v1321, 0.0
      %v1511 = vmax.f32 %v1370, 0.0
      %v1512 = vmax.f32 %v1419, 0.0
      %v1513 = vmax.f32 %v1468, 0.0
      %v1514 = vmax.f32 %v1323, 0.0
      %v1515 = vmax.f32 %v1372, 0.0
      %v1516 = vmax.f32 %v1421, 0.0
      %v1517 = vmax.f32 %v1470, 0.0
      %v1518 = vmax.f32 %v1326, 0.0
      %v1519 = vmax.f32 %v1375, 0.0
      %v1520 = vmax.f32 %v1424, 0.0
      %v1521 = vmax.f32 %v1473, 0.0
      %v1522 = vmax.f32 %v1328, 0.0
      %v1523 = vmax.f32 %v1377, 0.0
      %v1524 = vmax.f32 %v1426, 0.0
      %v1525 = vmax.f32 %v1475, 0.0
      %v1526 = vmax.f32 %v1331, 0.0
      %v1527 = vmax.f32 %v1380, 0.0
      %v1528 = vmax.f32 %v1429, 0.0
      %v1529 = vmax.f32 %v1478, 0.0
      %v1530 = vmax.f32 %v1333, 0.0
      %v1531 = vmax.f32 %v1382, 0.0
      %v1532 = vmax.f32 %v1431, 0.0
      %v1533 = vmax.f32 %v1480, 0.0
      %v1534 = vmax.f32 %v1336, 0.0
      %v1535 = vmax.f32 %v1385, 0.0
      %v1536 = vmax.f32 %v1434, 0.0
      %v1537 = vmax.f32 %v1483, 0.0
      %v1538 = vmax.f32 %v1338, 0.0
      %v1539 = vmax.f32 %v1387, 0.0
      %v1540 = vmax.f32 %v1436, 0.0
      %v1541 = vmax.f32 %v1485, 0.0
      %v1542 = vmax.f32 %v1341, 0.0
      %v1543 = vmax.f32 %v1390, 0.0
      %v1544 = vmax.f32 %v1439, 0.0
      %v1545 = vmax.f32 %v1488, 0.0
      %v1546 = vmax.f32 %v1343, 0.0
      %v1547 = vmax.f32 %v1392, 0.0
      %v1548 = vmax.f32 %v1441, 0.0
      %v1549 = vmax.f32 %v1490, 0.0
      %v1550 = vmax.f32 %v1346, 0.0
      %v1551 = vmax.f32 %v1395, 0.0
      %v1552 = vmax.f32 %v1444, 0.0
      %v1553 = vmax.f32 %v1493, 0.0
      %v1554 = vmax.f32 %v1348, 0.0
      %v1555 = vmax.f32 %v1397, 0.0
      %v1556 = vmax.f32 %v1446, 0.0
      %v1557 = vmax.f32 %v1495, 0.0
      %v1558 = vmax.f32 %v1351, 0.0
      %v1559 = vmax.f32 %v1400, 0.0
      %v1560 = vmax.f32 %v1449, 0.0
      %v1561 = vmax.f32 %v1498, 0.0
      %v1562 = vmax.f32 %v1353, 0.0
      %v1563 = vmax.f32 %v1402, 0.0
      %v1564 = vmax.f32 %v1451, 0.0
      %v1565 = vmax.f32 %v1500, 0.0
      %v1566 = vpack.c.bf16 %v1506, %v1502
      %v1567 = vpack.c.bf16 %v1507, %v1503
      %v1568 = vpack.c.bf16 %v1508, %v1504
      %v1569 = vpack.c.bf16 %v1509, %v1505
      %v1570 = vpack.c.bf16 %v1514, %v1510
      %v1571 = vpack.c.bf16 %v1515, %v1511
      %v1572 = vpack.c.bf16 %v1516, %v1512
      %v1573 = vpack.c.bf16 %v1517, %v1513
      %v1574 = vpack.c.bf16 %v1522, %v1518
      %v1575 = vpack.c.bf16 %v1523, %v1519
      %v1576 = vpack.c.bf16 %v1524, %v1520
      %v1577 = vpack.c.bf16 %v1525, %v1521
      %v1578 = vpack.c.bf16 %v1530, %v1526
      %v1579 = vpack.c.bf16 %v1531, %v1527
      %v1580 = vpack.c.bf16 %v1532, %v1528
      %v1581 = vpack.c.bf16 %v1533, %v1529
      %v1582 = vpack.c.bf16 %v1538, %v1534
      %v1583 = vpack.c.bf16 %v1539, %v1535
      %v1584 = vpack.c.bf16 %v1540, %v1536
      %v1585 = vpack.c.bf16 %v1541, %v1537
      %v1586 = vpack.c.bf16 %v1546, %v1542
      %v1587 = vpack.c.bf16 %v1547, %v1543
      %v1588 = vpack.c.bf16 %v1548, %v1544
      %v1589 = vpack.c.bf16 %v1549, %v1545
      %v1590 = vpack.c.bf16 %v1554, %v1550
      %v1591 = vpack.c.bf16 %v1555, %v1551
      %v1592 = vpack.c.bf16 %v1556, %v1552
      %v1593 = vpack.c.bf16 %v1557, %v1553
      %v1594 = vpack.c.bf16 %v1562, %v1558
      %v1595 = vpack.c.bf16 %v1563, %v1559
      %v1596 = vpack.c.bf16 %v1564, %v1560
      %v1597 = vpack.c.bf16 %v1565, %v1561
      %v1598 = vld [vmem:[%s4] sm:$0xf]
      %v1599 = vld [vmem:[%s4 + $0x4] sm:$0xf]
      %v1600 = vld [vmem:[%s4 + $0x8] sm:$0xf]
      %v1601 = vld [vmem:[%s4 + $0xc] sm:$0xf]
      %v1602 = vld [vmem:[%s4 + $0x10] sm:$0xf]
      %v1603 = vld [vmem:[%s4 + $0x14] sm:$0xf]
      %v1604 = vld [vmem:[%s4 + $0x18] sm:$0xf]
      %v1605 = vld [vmem:[%s4 + $0x1c] sm:$0xf]
      %v1606 = vld [vmem:[%s4 + $0x20] sm:$0xf]
      %v1607 = vld [vmem:[%s4 + $0x24] sm:$0xf]
      %v1608 = vld [vmem:[%s4 + $0x28] sm:$0xf]
      %v1609 = vld [vmem:[%s4 + $0x2c] sm:$0xf]
      %v1610 = vld [vmem:[%s4 + $0x30] sm:$0xf]
      %v1611 = vld [vmem:[%s4 + $0x34] sm:$0xf]
      %v1612 = vld [vmem:[%s4 + $0x38] sm:$0xf]
      %v1613 = vld [vmem:[%s4 + $0x3c] sm:$0xf]
      %v1630 = vunpack.c.l.b16 %v1598
      %v1631 = vunpack.c.l.b16 %v1599
      %v1632 = vunpack.c.l.b16 %v1600
      %v1633 = vunpack.c.l.b16 %v1601
      %v1634 = vunpack.c.l.b16 %v1602
      %v1635 = vunpack.c.l.b16 %v1603
      %v1636 = vunpack.c.l.b16 %v1604
      %v1637 = vunpack.c.l.b16 %v1605
      %v1638 = vunpack.c.l.b16 %v1606
      %v1639 = vunpack.c.l.b16 %v1607
      %v1640 = vunpack.c.l.b16 %v1608
      %v1641 = vunpack.c.l.b16 %v1609
      %v1642 = vunpack.c.l.b16 %v1610
      %v1643 = vunpack.c.l.b16 %v1611
      %v1644 = vunpack.c.l.b16 %v1612
      %v1645 = vunpack.c.l.b16 %v1613
      %v1646 = vpack.c.b16 %v1631, %v1630
      %v1647 = vpack.c.b16 %v1633, %v1632
      %v1648 = vpack.c.b16 %v1635, %v1634
      %v1649 = vpack.c.b16 %v1637, %v1636
      %v1650 = vpack.c.b16 %v1639, %v1638
      %v1651 = vpack.c.b16 %v1641, %v1640
      %v1652 = vpack.c.b16 %v1643, %v1642
      %v1653 = vpack.c.b16 %v1645, %v1644
      %1662 = vmatpush.bf16.msra.mxu0 %v1594
      %1663 = vmatpush.bf16.msra.mxu0 %v1590
      %1664 = vmatpush.bf16.msra.mxu0 %v1586
      %1665 = vmatpush.bf16.msra.mxu0 %v1582
      %1666 = vmatpush.bf16.msra.mxu0 %v1578
      %1667 = vmatpush.bf16.msra.mxu0 %v1574
      %1668 = vmatpush.bf16.msra.mxu0 %v1570
      %1669 = vmatpush.bf16.msra.mxu0 %v1566
      %1670 = vmatmul.bf16.gmra.mxu0 %v1646
      %v1671 = vpop.f32.mrf.mxu0
      %v1672 = vadd.f32 0.0, %v1671
      %v1673 = vpop.f32.mrf.mxu0
      %v1674 = vadd.f32 0.0, %v1673
      %1675 = vmatmul.bf16.gmra.mxu0 %v1647
      %v1676 = vpop.f32.mrf.mxu0
      %v1677 = vadd.f32 0.0, %v1676
      %v1678 = vpop.f32.mrf.mxu0
      %v1679 = vadd.f32 0.0, %v1678
      %1680 = vmatmul.bf16.gmra.mxu0 %v1648
      %v1681 = vpop.f32.mrf.mxu0
      %v1682 = vadd.f32 0.0, %v1681
      %v1683 = vpop.f32.mrf.mxu0
      %v1684 = vadd.f32 0.0, %v1683
      %1685 = vmatmul.bf16.gmra.mxu0 %v1649
      %v1686 = vpop.f32.mrf.mxu0
      %v1687 = vadd.f32 0.0, %v1686
      %v1688 = vpop.f32.mrf.mxu0
      %v1689 = vadd.f32 0.0, %v1688
      %1690 = vmatmul.bf16.gmra.mxu0 %v1650
      %v1691 = vpop.f32.mrf.mxu0
      %v1692 = vadd.f32 0.0, %v1691
      %v1693 = vpop.f32.mrf.mxu0
      %v1694 = vadd.f32 0.0, %v1693
      %1695 = vmatmul.bf16.gmra.mxu0 %v1651
      %v1696 = vpop.f32.mrf.mxu0
      %v1697 = vadd.f32 0.0, %v1696
      %v1698 = vpop.f32.mrf.mxu0
      %v1699 = vadd.f32 0.0, %v1698
      %1700 = vmatmul.bf16.gmra.mxu0 %v1652
      %v1701 = vpop.f32.mrf.mxu0
      %v1702 = vadd.f32 0.0, %v1701
      %v1703 = vpop.f32.mrf.mxu0
      %v1704 = vadd.f32 0.0, %v1703
      %1705 = vmatmul.bf16.gmra.mxu0 %v1653
      %v1706 = vpop.f32.mrf.mxu0
      %v1707 = vadd.f32 0.0, %v1706
      %v1708 = vpop.f32.mrf.mxu0
      %v1709 = vadd.f32 0.0, %v1708
      %1710 = vdwg.mxu0
      %1711 = vmatpush.bf16.msra.mxu0 %v1595
      %1712 = vmatpush.bf16.msra.mxu0 %v1591
      %1713 = vmatpush.bf16.msra.mxu0 %v1587
      %1714 = vmatpush.bf16.msra.mxu0 %v1583
      %1715 = vmatpush.bf16.msra.mxu0 %v1579
      %1716 = vmatpush.bf16.msra.mxu0 %v1575
      %1717 = vmatpush.bf16.msra.mxu0 %v1571
      %1718 = vmatpush.bf16.msra.mxu0 %v1567
      %1719 = vmatmul.bf16.gmra.mxu0 %v1646
      %v1720 = vpop.f32.mrf.mxu0
      %v1721 = vadd.f32 0.0, %v1720
      %v1722 = vpop.f32.mrf.mxu0
      %v1723 = vadd.f32 0.0, %v1722
      %1724 = vmatmul.bf16.gmra.mxu0 %v1647
      %v1725 = vpop.f32.mrf.mxu0
      %v1726 = vadd.f32 0.0, %v1725
      %v1727 = vpop.f32.mrf.mxu0
      %v1728 = vadd.f32 0.0, %v1727
      %1729 = vmatmul.bf16.gmra.mxu0 %v1648
      %v1730 = vpop.f32.mrf.mxu0
      %v1731 = vadd.f32 0.0, %v1730
      %v1732 = vpop.f32.mrf.mxu0
      %v1733 = vadd.f32 0.0, %v1732
      %1734 = vmatmul.bf16.gmra.mxu0 %v1649
      %v1735 = vpop.f32.mrf.mxu0
      %v1736 = vadd.f32 0.0, %v1735
      %v1737 = vpop.f32.mrf.mxu0
      %v1738 = vadd.f32 0.0, %v1737
      %1739 = vmatmul.bf16.gmra.mxu0 %v1650
      %v1740 = vpop.f32.mrf.mxu0
      %v1741 = vadd.f32 0.0, %v1740
      %v1742 = vpop.f32.mrf.mxu0
      %v1743 = vadd.f32 0.0, %v1742
      %1744 = vmatmul.bf16.gmra.mxu0 %v1651
      %v1745 = vpop.f32.mrf.mxu0
      %v1746 = vadd.f32 0.0, %v1745
      %v1747 = vpop.f32.mrf.mxu0
      %v1748 = vadd.f32 0.0, %v1747
      %1749 = vmatmul.bf16.gmra.mxu0 %v1652
      %v1750 = vpop.f32.mrf.mxu0
      %v1751 = vadd.f32 0.0, %v1750
      %v1752 = vpop.f32.mrf.mxu0
      %v1753 = vadd.f32 0.0, %v1752
      %1754 = vmatmul.bf16.gmra.mxu0 %v1653
      %v1755 = vpop.f32.mrf.mxu0
      %v1756 = vadd.f32 0.0, %v1755
      %v1757 = vpop.f32.mrf.mxu0
      %v1758 = vadd.f32 0.0, %v1757
      %1759 = vdwg.mxu0
      %1760 = vmatpush.bf16.msra.mxu0 %v1596
      %1761 = vmatpush.bf16.msra.mxu0 %v1592
      %1762 = vmatpush.bf16.msra.mxu0 %v1588
      %1763 = vmatpush.bf16.msra.mxu0 %v1584
      %1764 = vmatpush.bf16.msra.mxu0 %v1580
      %1765 = vmatpush.bf16.msra.mxu0 %v1576
      %1766 = vmatpush.bf16.msra.mxu0 %v1572
      %1767 = vmatpush.bf16.msra.mxu0 %v1568
      %1768 = vmatmul.bf16.gmra.mxu0 %v1646
      %v1769 = vpop.f32.mrf.mxu0
      %v1770 = vadd.f32 0.0, %v1769
      %v1771 = vpop.f32.mrf.mxu0
      %v1772 = vadd.f32 0.0, %v1771
      %1773 = vmatmul.bf16.gmra.mxu0 %v1647
      %v1774 = vpop.f32.mrf.mxu0
      %v1775 = vadd.f32 0.0, %v1774
      %v1776 = vpop.f32.mrf.mxu0
      %v1777 = vadd.f32 0.0, %v1776
      %1778 = vmatmul.bf16.gmra.mxu0 %v1648
      %v1779 = vpop.f32.mrf.mxu0
      %v1780 = vadd.f32 0.0, %v1779
      %v1781 = vpop.f32.mrf.mxu0
      %v1782 = vadd.f32 0.0, %v1781
      %1783 = vmatmul.bf16.gmra.mxu0 %v1649
      %v1784 = vpop.f32.mrf.mxu0
      %v1785 = vadd.f32 0.0, %v1784
      %v1786 = vpop.f32.mrf.mxu0
      %v1787 = vadd.f32 0.0, %v1786
      %1788 = vmatmul.bf16.gmra.mxu0 %v1650
      %v1789 = vpop.f32.mrf.mxu0
      %v1790 = vadd.f32 0.0, %v1789
      %v1791 = vpop.f32.mrf.mxu0
      %v1792 = vadd.f32 0.0, %v1791
      %1793 = vmatmul.bf16.gmra.mxu0 %v1651
      %v1794 = vpop.f32.mrf.mxu0
      %v1795 = vadd.f32 0.0, %v1794
      %v1796 = vpop.f32.mrf.mxu0
      %v1797 = vadd.f32 0.0, %v1796
      %1798 = vmatmul.bf16.gmra.mxu0 %v1652
      %v1799 = vpop.f32.mrf.mxu0
      %v1800 = vadd.f32 0.0, %v1799
      %v1801 = vpop.f32.mrf.mxu0
      %v1802 = vadd.f32 0.0, %v1801
      %1803 = vmatmul.bf16.gmra.mxu0 %v1653
      %v1804 = vpop.f32.mrf.mxu0
      %v1805 = vadd.f32 0.0, %v1804
      %v1806 = vpop.f32.mrf.mxu0
      %v1807 = vadd.f32 0.0, %v1806
      %1808 = vdwg.mxu0
      %1809 = vmatpush.bf16.msra.mxu0 %v1597
      %1810 = vmatpush.bf16.msra.mxu0 %v1593
      %1811 = vmatpush.bf16.msra.mxu0 %v1589
      %1812 = vmatpush.bf16.msra.mxu0 %v1585
      %1813 = vmatpush.bf16.msra.mxu0 %v1581
      %1814 = vmatpush.bf16.msra.mxu0 %v1577
      %1815 = vmatpush.bf16.msra.mxu0 %v1573
      %1816 = vmatpush.bf16.msra.mxu0 %v1569
      %1817 = vmatmul.bf16.gmra.mxu0 %v1646
      %v1818 = vpop.f32.mrf.mxu0
      %v1819 = vadd.f32 0.0, %v1818
      %v1820 = vpop.f32.mrf.mxu0
      %v1821 = vadd.f32 0.0, %v1820
      %1822 = vmatmul.bf16.gmra.mxu0 %v1647
      %v1823 = vpop.f32.mrf.mxu0
      %v1824 = vadd.f32 0.0, %v1823
      %v1825 = vpop.f32.mrf.mxu0
      %v1826 = vadd.f32 0.0, %v1825
      %1827 = vmatmul.bf16.gmra.mxu0 %v1648
      %v1828 = vpop.f32.mrf.mxu0
      %v1829 = vadd.f32 0.0, %v1828
      %v1830 = vpop.f32.mrf.mxu0
      %v1831 = vadd.f32 0.0, %v1830
      %1832 = vmatmul.bf16.gmra.mxu0 %v1649
      %v1833 = vpop.f32.mrf.mxu0
      %v1834 = vadd.f32 0.0, %v1833
      %v1835 = vpop.f32.mrf.mxu0
      %v1836 = vadd.f32 0.0, %v1835
      %1837 = vmatmul.bf16.gmra.mxu0 %v1650
      %v1838 = vpop.f32.mrf.mxu0
      %v1839 = vadd.f32 0.0, %v1838
      %v1840 = vpop.f32.mrf.mxu0
      %v1841 = vadd.f32 0.0, %v1840
      %1842 = vmatmul.bf16.gmra.mxu0 %v1651
      %v1843 = vpop.f32.mrf.mxu0
      %v1844 = vadd.f32 0.0, %v1843
      %v1845 = vpop.f32.mrf.mxu0
      %v1846 = vadd.f32 0.0, %v1845
      %1847 = vmatmul.bf16.gmra.mxu0 %v1652
      %v1848 = vpop.f32.mrf.mxu0
      %v1849 = vadd.f32 0.0, %v1848
      %v1850 = vpop.f32.mrf.mxu0
      %v1851 = vadd.f32 0.0, %v1850
      %1852 = vmatmul.bf16.gmra.mxu0 %v1653
      %v1853 = vpop.f32.mrf.mxu0
      %v1854 = vadd.f32 0.0, %v1853
      %v1855 = vpop.f32.mrf.mxu0
      %v1856 = vadd.f32 0.0, %v1855
      %1857 = vdwg.mxu0
      %v1858 = vmax.f32 %v1672, 0.0
      %v1859 = vmax.f32 %v1721, 0.0
      %v1860 = vmax.f32 %v1770, 0.0
      %v1861 = vmax.f32 %v1819, 0.0
      %v1862 = vmax.f32 %v1674, 0.0
      %v1863 = vmax.f32 %v1723, 0.0
      %v1864 = vmax.f32 %v1772, 0.0
      %v1865 = vmax.f32 %v1821, 0.0
      %v1866 = vmax.f32 %v1677, 0.0
      %v1867 = vmax.f32 %v1726, 0.0
      %v1868 = vmax.f32 %v1775, 0.0
      %v1869 = vmax.f32 %v1824, 0.0
      %v1870 = vmax.f32 %v1679, 0.0
      %v1871 = vmax.f32 %v1728, 0.0
      %v1872 = vmax.f32 %v1777, 0.0
      %v1873 = vmax.f32 %v1826, 0.0
      %v1874 = vmax.f32 %v1682, 0.0
      %v1875 = vmax.f32 %v1731, 0.0
      %v1876 = vmax.f32 %v1780, 0.0
      %v1877 = vmax.f32 %v1829, 0.0
      %v1878 = vmax.f32 %v1684, 0.0
      %v1879 = vmax.f32 %v1733, 0.0
      %v1880 = vmax.f32 %v1782, 0.0
      %v1881 = vmax.f32 %v1831, 0.0
      %v1882 = vmax.f32 %v1687, 0.0
      %v1883 = vmax.f32 %v1736, 0.0
      %v1884 = vmax.f32 %v1785, 0.0
      %v1885 = vmax.f32 %v1834, 0.0
      %v1886 = vmax.f32 %v1689, 0.0
      %v1887 = vmax.f32 %v1738, 0.0
      %v1888 = vmax.f32 %v1787, 0.0
      %v1889 = vmax.f32 %v1836, 0.0
      %v1890 = vmax.f32 %v1692, 0.0
      %v1891 = vmax.f32 %v1741, 0.0
      %v1892 = vmax.f32 %v1790, 0.0
      %v1893 = vmax.f32 %v1839, 0.0
      %v1894 = vmax.f32 %v1694, 0.0
      %v1895 = vmax.f32 %v1743, 0.0
      %v1896 = vmax.f32 %v1792, 0.0
      %v1897 = vmax.f32 %v1841, 0.0
      %v1898 = vmax.f32 %v1697, 0.0
      %v1899 = vmax.f32 %v1746, 0.0
      %v1900 = vmax.f32 %v1795, 0.0
      %v1901 = vmax.f32 %v1844, 0.0
      %v1902 = vmax.f32 %v1699, 0.0
      %v1903 = vmax.f32 %v1748, 0.0
      %v1904 = vmax.f32 %v1797, 0.0
      %v1905 = vmax.f32 %v1846, 0.0
      %v1906 = vmax.f32 %v1702, 0.0
      %v1907 = vmax.f32 %v1751, 0.0
      %v1908 = vmax.f32 %v1800, 0.0
      %v1909 = vmax.f32 %v1849, 0.0
      %v1910 = vmax.f32 %v1704, 0.0
      %v1911 = vmax.f32 %v1753, 0.0
      %v1912 = vmax.f32 %v1802, 0.0
      %v1913 = vmax.f32 %v1851, 0.0
      %v1914 = vmax.f32 %v1707, 0.0
      %v1915 = vmax.f32 %v1756, 0.0
      %v1916 = vmax.f32 %v1805, 0.0
      %v1917 = vmax.f32 %v1854, 0.0
      %v1918 = vmax.f32 %v1709, 0.0
      %v1919 = vmax.f32 %v1758, 0.0
      %v1920 = vmax.f32 %v1807, 0.0
      %v1921 = vmax.f32 %v1856, 0.0
      %v1922 = vpack.c.bf16 %v1862, %v1858
      %v1923 = vpack.c.bf16 %v1863, %v1859
      %v1924 = vpack.c.bf16 %v1864, %v1860
      %v1925 = vpack.c.bf16 %v1865, %v1861
      %v1926 = vpack.c.bf16 %v1870, %v1866
      %v1927 = vpack.c.bf16 %v1871, %v1867
      %v1928 = vpack.c.bf16 %v1872, %v1868
      %v1929 = vpack.c.bf16 %v1873, %v1869
      %v1930 = vpack.c.bf16 %v1878, %v1874
      %v1931 = vpack.c.bf16 %v1879, %v1875
      %v1932 = vpack.c.bf16 %v1880, %v1876
      %v1933 = vpack.c.bf16 %v1881, %v1877
      %v1934 = vpack.c.bf16 %v1886, %v1882
      %v1935 = vpack.c.bf16 %v1887, %v1883
      %v1936 = vpack.c.bf16 %v1888, %v1884
      %v1937 = vpack.c.bf16 %v1889, %v1885
      %v1938 = vpack.c.bf16 %v1894, %v1890
      %v1939 = vpack.c.bf16 %v1895, %v1891
      %v1940 = vpack.c.bf16 %v1896, %v1892
      %v1941 = vpack.c.bf16 %v1897, %v1893
      %v1942 = vpack.c.bf16 %v1902, %v1898
      %v1943 = vpack.c.bf16 %v1903, %v1899
      %v1944 = vpack.c.bf16 %v1904, %v1900
      %v1945 = vpack.c.bf16 %v1905, %v1901
      %v1946 = vpack.c.bf16 %v1910, %v1906
      %v1947 = vpack.c.bf16 %v1911, %v1907
      %v1948 = vpack.c.bf16 %v1912, %v1908
      %v1949 = vpack.c.bf16 %v1913, %v1909
      %v1950 = vpack.c.bf16 %v1918, %v1914
      %v1951 = vpack.c.bf16 %v1919, %v1915
      %v1952 = vpack.c.bf16 %v1920, %v1916
      %v1953 = vpack.c.bf16 %v1921, %v1917
      %v1954 = vld [vmem:[%s5] sm:$0xf]
      %v1955 = vld [vmem:[%s5 + $0x4] sm:$0xf]
      %v1956 = vld [vmem:[%s5 + $0x8] sm:$0xf]
      %v1957 = vld [vmem:[%s5 + $0xc] sm:$0xf]
      %v1958 = vld [vmem:[%s5 + $0x10] sm:$0xf]
      %v1959 = vld [vmem:[%s5 + $0x14] sm:$0xf]
      %v1960 = vld [vmem:[%s5 + $0x18] sm:$0xf]
      %v1961 = vld [vmem:[%s5 + $0x1c] sm:$0xf]
      %v1962 = vld [vmem:[%s5 + $0x20] sm:$0xf]
      %v1963 = vld [vmem:[%s5 + $0x24] sm:$0xf]
      %v1964 = vld [vmem:[%s5 + $0x28] sm:$0xf]
      %v1965 = vld [vmem:[%s5 + $0x2c] sm:$0xf]
      %v1966 = vld [vmem:[%s5 + $0x30] sm:$0xf]
      %v1967 = vld [vmem:[%s5 + $0x34] sm:$0xf]
      %v1968 = vld [vmem:[%s5 + $0x38] sm:$0xf]
      %v1969 = vld [vmem:[%s5 + $0x3c] sm:$0xf]
      %v1986 = vunpack.c.l.b16 %v1954
      %v1987 = vunpack.c.l.b16 %v1955
      %v1988 = vunpack.c.l.b16 %v1956
      %v1989 = vunpack.c.l.b16 %v1957
      %v1990 = vunpack.c.l.b16 %v1958
      %v1991 = vunpack.c.l.b16 %v1959
      %v1992 = vunpack.c.l.b16 %v1960
      %v1993 = vunpack.c.l.b16 %v1961
      %v1994 = vunpack.c.l.b16 %v1962
      %v1995 = vunpack.c.l.b16 %v1963
      %v1996 = vunpack.c.l.b16 %v1964
      %v1997 = vunpack.c.l.b16 %v1965
      %v1998 = vunpack.c.l.b16 %v1966
      %v1999 = vunpack.c.l.b16 %v1967
      %v2000 = vunpack.c.l.b16 %v1968
      %v2001 = vunpack.c.l.b16 %v1969
      %v2002 = vpack.c.b16 %v1987, %v1986
      %v2003 = vpack.c.b16 %v1989, %v1988
      %v2004 = vpack.c.b16 %v1991, %v1990
      %v2005 = vpack.c.b16 %v1993, %v1992
      %v2006 = vpack.c.b16 %v1995, %v1994
      %v2007 = vpack.c.b16 %v1997, %v1996
      %v2008 = vpack.c.b16 %v1999, %v1998
      %v2009 = vpack.c.b16 %v2001, %v2000
      %2018 = vmatpush.bf16.msra.mxu0 %v1950
      %2019 = vmatpush.bf16.msra.mxu0 %v1946
      %2020 = vmatpush.bf16.msra.mxu0 %v1942
      %2021 = vmatpush.bf16.msra.mxu0 %v1938
      %2022 = vmatpush.bf16.msra.mxu0 %v1934
      %2023 = vmatpush.bf16.msra.mxu0 %v1930
      %2024 = vmatpush.bf16.msra.mxu0 %v1926
      %2025 = vmatpush.bf16.msra.mxu0 %v1922
      %2026 = vmatmul.bf16.gmra.mxu0 %v2002
      %v2027 = vpop.f32.mrf.mxu0
      %v2028 = vadd.f32 0.0, %v2027
      %v2029 = vpop.f32.mrf.mxu0
      %v2030 = vadd.f32 0.0, %v2029
      %2031 = vmatmul.bf16.gmra.mxu0 %v2003
      %v2032 = vpop.f32.mrf.mxu0
      %v2033 = vadd.f32 0.0, %v2032
      %v2034 = vpop.f32.mrf.mxu0
      %v2035 = vadd.f32 0.0, %v2034
      %2036 = vmatmul.bf16.gmra.mxu0 %v2004
      %v2037 = vpop.f32.mrf.mxu0
      %v2038 = vadd.f32 0.0, %v2037
      %v2039 = vpop.f32.mrf.mxu0
      %v2040 = vadd.f32 0.0, %v2039
      %2041 = vmatmul.bf16.gmra.mxu0 %v2005
      %v2042 = vpop.f32.mrf.mxu0
      %v2043 = vadd.f32 0.0, %v2042
      %v2044 = vpop.f32.mrf.mxu0
      %v2045 = vadd.f32 0.0, %v2044
      %2046 = vmatmul.bf16.gmra.mxu0 %v2006
      %v2047 = vpop.f32.mrf.mxu0
      %v2048 = vadd.f32 0.0, %v2047
      %v2049 = vpop.f32.mrf.mxu0
      %v2050 = vadd.f32 0.0, %v2049
      %2051 = vmatmul.bf16.gmra.mxu0 %v2007
      %v2052 = vpop.f32.mrf.mxu0
      %v2053 = vadd.f32 0.0, %v2052
      %v2054 = vpop.f32.mrf.mxu0
      %v2055 = vadd.f32 0.0, %v2054
      %2056 = vmatmul.bf16.gmra.mxu0 %v2008
      %v2057 = vpop.f32.mrf.mxu0
      %v2058 = vadd.f32 0.0, %v2057
      %v2059 = vpop.f32.mrf.mxu0
      %v2060 = vadd.f32 0.0, %v2059
      %2061 = vmatmul.bf16.gmra.mxu0 %v2009
      %v2062 = vpop.f32.mrf.mxu0
      %v2063 = vadd.f32 0.0, %v2062
      %v2064 = vpop.f32.mrf.mxu0
      %v2065 = vadd.f32 0.0, %v2064
      %2066 = vdwg.mxu0
      %2067 = vmatpush.bf16.msra.mxu0 %v1951
      %2068 = vmatpush.bf16.msra.mxu0 %v1947
      %2069 = vmatpush.bf16.msra.mxu0 %v1943
      %2070 = vmatpush.bf16.msra.mxu0 %v1939
      %2071 = vmatpush.bf16.msra.mxu0 %v1935
      %2072 = vmatpush.bf16.msra.mxu0 %v1931
      %2073 = vmatpush.bf16.msra.mxu0 %v1927
      %2074 = vmatpush.bf16.msra.mxu0 %v1923
      %2075 = vmatmul.bf16.gmra.mxu0 %v2002
      %v2076 = vpop.f32.mrf.mxu0
      %v2077 = vadd.f32 0.0, %v2076
      %v2078 = vpop.f32.mrf.mxu0
      %v2079 = vadd.f32 0.0, %v2078
      %2080 = vmatmul.bf16.gmra.mxu0 %v2003
      %v2081 = vpop.f32.mrf.mxu0
      %v2082 = vadd.f32 0.0, %v2081
      %v2083 = vpop.f32.mrf.mxu0
      %v2084 = vadd.f32 0.0, %v2083
      %2085 = vmatmul.bf16.gmra.mxu0 %v2004
      %v2086 = vpop.f32.mrf.mxu0
      %v2087 = vadd.f32 0.0, %v2086
      %v2088 = vpop.f32.mrf.mxu0
      %v2089 = vadd.f32 0.0, %v2088
      %2090 = vmatmul.bf16.gmra.mxu0 %v2005
      %v2091 = vpop.f32.mrf.mxu0
      %v2092 = vadd.f32 0.0, %v2091
      %v2093 = vpop.f32.mrf.mxu0
      %v2094 = vadd.f32 0.0, %v2093
      %2095 = vmatmul.bf16.gmra.mxu0 %v2006
      %v2096 = vpop.f32.mrf.mxu0
      %v2097 = vadd.f32 0.0, %v2096
      %v2098 = vpop.f32.mrf.mxu0
      %v2099 = vadd.f32 0.0, %v2098
      %2100 = vmatmul.bf16.gmra.mxu0 %v2007
      %v2101 = vpop.f32.mrf.mxu0
      %v2102 = vadd.f32 0.0, %v2101
      %v2103 = vpop.f32.mrf.mxu0
      %v2104 = vadd.f32 0.0, %v2103
      %2105 = vmatmul.bf16.gmra.mxu0 %v2008
      %v2106 = vpop.f32.mrf.mxu0
      %v2107 = vadd.f32 0.0, %v2106
      %v2108 = vpop.f32.mrf.mxu0
      %v2109 = vadd.f32 0.0, %v2108
      %2110 = vmatmul.bf16.gmra.mxu0 %v2009
      %v2111 = vpop.f32.mrf.mxu0
      %v2112 = vadd.f32 0.0, %v2111
      %v2113 = vpop.f32.mrf.mxu0
      %v2114 = vadd.f32 0.0, %v2113
      %2115 = vdwg.mxu0
      %2116 = vmatpush.bf16.msra.mxu0 %v1952
      %2117 = vmatpush.bf16.msra.mxu0 %v1948
      %2118 = vmatpush.bf16.msra.mxu0 %v1944
      %2119 = vmatpush.bf16.msra.mxu0 %v1940
      %2120 = vmatpush.bf16.msra.mxu0 %v1936
      %2121 = vmatpush.bf16.msra.mxu0 %v1932
      %2122 = vmatpush.bf16.msra.mxu0 %v1928
      %2123 = vmatpush.bf16.msra.mxu0 %v1924
      %2124 = vmatmul.bf16.gmra.mxu0 %v2002
      %v2125 = vpop.f32.mrf.mxu0
      %v2126 = vadd.f32 0.0, %v2125
      %v2127 = vpop.f32.mrf.mxu0
      %v2128 = vadd.f32 0.0, %v2127
      %2129 = vmatmul.bf16.gmra.mxu0 %v2003
      %v2130 = vpop.f32.mrf.mxu0
      %v2131 = vadd.f32 0.0, %v2130
      %v2132 = vpop.f32.mrf.mxu0
      %v2133 = vadd.f32 0.0, %v2132
      %2134 = vmatmul.bf16.gmra.mxu0 %v2004
      %v2135 = vpop.f32.mrf.mxu0
      %v2136 = vadd.f32 0.0, %v2135
      %v2137 = vpop.f32.mrf.mxu0
      %v2138 = vadd.f32 0.0, %v2137
      %2139 = vmatmul.bf16.gmra.mxu0 %v2005
      %v2140 = vpop.f32.mrf.mxu0
      %v2141 = vadd.f32 0.0, %v2140
      %v2142 = vpop.f32.mrf.mxu0
      %v2143 = vadd.f32 0.0, %v2142
      %2144 = vmatmul.bf16.gmra.mxu0 %v2006
      %v2145 = vpop.f32.mrf.mxu0
      %v2146 = vadd.f32 0.0, %v2145
      %v2147 = vpop.f32.mrf.mxu0
      %v2148 = vadd.f32 0.0, %v2147
      %2149 = vmatmul.bf16.gmra.mxu0 %v2007
      %v2150 = vpop.f32.mrf.mxu0
      %v2151 = vadd.f32 0.0, %v2150
      %v2152 = vpop.f32.mrf.mxu0
      %v2153 = vadd.f32 0.0, %v2152
      %2154 = vmatmul.bf16.gmra.mxu0 %v2008
      %v2155 = vpop.f32.mrf.mxu0
      %v2156 = vadd.f32 0.0, %v2155
      %v2157 = vpop.f32.mrf.mxu0
      %v2158 = vadd.f32 0.0, %v2157
      %2159 = vmatmul.bf16.gmra.mxu0 %v2009
      %v2160 = vpop.f32.mrf.mxu0
      %v2161 = vadd.f32 0.0, %v2160
      %v2162 = vpop.f32.mrf.mxu0
      %v2163 = vadd.f32 0.0, %v2162
      %2164 = vdwg.mxu0
      %2165 = vmatpush.bf16.msra.mxu0 %v1953
      %2166 = vmatpush.bf16.msra.mxu0 %v1949
      %2167 = vmatpush.bf16.msra.mxu0 %v1945
      %2168 = vmatpush.bf16.msra.mxu0 %v1941
      %2169 = vmatpush.bf16.msra.mxu0 %v1937
      %2170 = vmatpush.bf16.msra.mxu0 %v1933
      %2171 = vmatpush.bf16.msra.mxu0 %v1929
      %2172 = vmatpush.bf16.msra.mxu0 %v1925
      %2173 = vmatmul.bf16.gmra.mxu0 %v2002
      %v2174 = vpop.f32.mrf.mxu0
      %v2175 = vadd.f32 0.0, %v2174
      %v2176 = vpop.f32.mrf.mxu0
      %v2177 = vadd.f32 0.0, %v2176
      %2178 = vmatmul.bf16.gmra.mxu0 %v2003
      %v2179 = vpop.f32.mrf.mxu0
      %v2180 = vadd.f32 0.0, %v2179
      %v2181 = vpop.f32.mrf.mxu0
      %v2182 = vadd.f32 0.0, %v2181
      %2183 = vmatmul.bf16.gmra.mxu0 %v2004
      %v2184 = vpop.f32.mrf.mxu0
      %v2185 = vadd.f32 0.0, %v2184
      %v2186 = vpop.f32.mrf.mxu0
      %v2187 = vadd.f32 0.0, %v2186
      %2188 = vmatmul.bf16.gmra.mxu0 %v2005
      %v2189 = vpop.f32.mrf.mxu0
      %v2190 = vadd.f32 0.0, %v2189
      %v2191 = vpop.f32.mrf.mxu0
      %v2192 = vadd.f32 0.0, %v2191
      %2193 = vmatmul.bf16.gmra.mxu0 %v2006
      %v2194 = vpop.f32.mrf.mxu0
      %v2195 = vadd.f32 0.0, %v2194
      %v2196 = vpop.f32.mrf.mxu0
      %v2197 = vadd.f32 0.0, %v2196
      %2198 = vmatmul.bf16.gmra.mxu0 %v2007
      %v2199 = vpop.f32.mrf.mxu0
      %v2200 = vadd.f32 0.0, %v2199
      %v2201 = vpop.f32.mrf.mxu0
      %v2202 = vadd.f32 0.0, %v2201
      %2203 = vmatmul.bf16.gmra.mxu0 %v2008
      %v2204 = vpop.f32.mrf.mxu0
      %v2205 = vadd.f32 0.0, %v2204
      %v2206 = vpop.f32.mrf.mxu0
      %v2207 = vadd.f32 0.0, %v2206
      %2208 = vmatmul.bf16.gmra.mxu0 %v2009
      %v2209 = vpop.f32.mrf.mxu0
      %v2210 = vadd.f32 0.0, %v2209
      %v2211 = vpop.f32.mrf.mxu0
      %v2212 = vadd.f32 0.0, %v2211
      %2213 = vdwg.mxu0
      %v2214 = vmax.f32 %v2028, 0.0
      %v2215 = vmax.f32 %v2077, 0.0
      %v2216 = vmax.f32 %v2126, 0.0
      %v2217 = vmax.f32 %v2175, 0.0
      %v2218 = vmax.f32 %v2030, 0.0
      %v2219 = vmax.f32 %v2079, 0.0
      %v2220 = vmax.f32 %v2128, 0.0
      %v2221 = vmax.f32 %v2177, 0.0
      %v2222 = vmax.f32 %v2033, 0.0
      %v2223 = vmax.f32 %v2082, 0.0
      %v2224 = vmax.f32 %v2131, 0.0
      %v2225 = vmax.f32 %v2180, 0.0
      %v2226 = vmax.f32 %v2035, 0.0
      %v2227 = vmax.f32 %v2084, 0.0
      %v2228 = vmax.f32 %v2133, 0.0
      %v2229 = vmax.f32 %v2182, 0.0
      %v2230 = vmax.f32 %v2038, 0.0
      %v2231 = vmax.f32 %v2087, 0.0
      %v2232 = vmax.f32 %v2136, 0.0
      %v2233 = vmax.f32 %v2185, 0.0
      %v2234 = vmax.f32 %v2040, 0.0
      %v2235 = vmax.f32 %v2089, 0.0
      %v2236 = vmax.f32 %v2138, 0.0
      %v2237 = vmax.f32 %v2187, 0.0
      %v2238 = vmax.f32 %v2043, 0.0
      %v2239 = vmax.f32 %v2092, 0.0
      %v2240 = vmax.f32 %v2141, 0.0
      %v2241 = vmax.f32 %v2190, 0.0
      %v2242 = vmax.f32 %v2045, 0.0
      %v2243 = vmax.f32 %v2094, 0.0
      %v2244 = vmax.f32 %v2143, 0.0
      %v2245 = vmax.f32 %v2192, 0.0
      %v2246 = vmax.f32 %v2048, 0.0
      %v2247 = vmax.f32 %v2097, 0.0
      %v2248 = vmax.f32 %v2146, 0.0
      %v2249 = vmax.f32 %v2195, 0.0
      %v2250 = vmax.f32 %v2050, 0.0
      %v2251 = vmax.f32 %v2099, 0.0
      %v2252 = vmax.f32 %v2148, 0.0
      %v2253 = vmax.f32 %v2197, 0.0
      %v2254 = vmax.f32 %v2053, 0.0
      %v2255 = vmax.f32 %v2102, 0.0
      %v2256 = vmax.f32 %v2151, 0.0
      %v2257 = vmax.f32 %v2200, 0.0
      %v2258 = vmax.f32 %v2055, 0.0
      %v2259 = vmax.f32 %v2104, 0.0
      %v2260 = vmax.f32 %v2153, 0.0
      %v2261 = vmax.f32 %v2202, 0.0
      %v2262 = vmax.f32 %v2058, 0.0
      %v2263 = vmax.f32 %v2107, 0.0
      %v2264 = vmax.f32 %v2156, 0.0
      %v2265 = vmax.f32 %v2205, 0.0
      %v2266 = vmax.f32 %v2060, 0.0
      %v2267 = vmax.f32 %v2109, 0.0
      %v2268 = vmax.f32 %v2158, 0.0
      %v2269 = vmax.f32 %v2207, 0.0
      %v2270 = vmax.f32 %v2063, 0.0
      %v2271 = vmax.f32 %v2112, 0.0
      %v2272 = vmax.f32 %v2161, 0.0
      %v2273 = vmax.f32 %v2210, 0.0
      %v2274 = vmax.f32 %v2065, 0.0
      %v2275 = vmax.f32 %v2114, 0.0
      %v2276 = vmax.f32 %v2163, 0.0
      %v2277 = vmax.f32 %v2212, 0.0
      %v2278 = vpack.c.bf16 %v2218, %v2214
      %v2279 = vpack.c.bf16 %v2219, %v2215
      %v2280 = vpack.c.bf16 %v2220, %v2216
      %v2281 = vpack.c.bf16 %v2221, %v2217
      %v2282 = vpack.c.bf16 %v2226, %v2222
      %v2283 = vpack.c.bf16 %v2227, %v2223
      %v2284 = vpack.c.bf16 %v2228, %v2224
      %v2285 = vpack.c.bf16 %v2229, %v2225
      %v2286 = vpack.c.bf16 %v2234, %v2230
      %v2287 = vpack.c.bf16 %v2235, %v2231
      %v2288 = vpack.c.bf16 %v2236, %v2232
      %v2289 = vpack.c.bf16 %v2237, %v2233
      %v2290 = vpack.c.bf16 %v2242, %v2238
      %v2291 = vpack.c.bf16 %v2243, %v2239
      %v2292 = vpack.c.bf16 %v2244, %v2240
      %v2293 = vpack.c.bf16 %v2245, %v2241
      %v2294 = vpack.c.bf16 %v2250, %v2246
      %v2295 = vpack.c.bf16 %v2251, %v2247
      %v2296 = vpack.c.bf16 %v2252, %v2248
      %v2297 = vpack.c.bf16 %v2253, %v2249
      %v2298 = vpack.c.bf16 %v2258, %v2254
      %v2299 = vpack.c.bf16 %v2259, %v2255
      %v2300 = vpack.c.bf16 %v2260, %v2256
      %v2301 = vpack.c.bf16 %v2261, %v2257
      %v2302 = vpack.c.bf16 %v2266, %v2262
      %v2303 = vpack.c.bf16 %v2267, %v2263
      %v2304 = vpack.c.bf16 %v2268, %v2264
      %v2305 = vpack.c.bf16 %v2269, %v2265
      %v2306 = vpack.c.bf16 %v2274, %v2270
      %v2307 = vpack.c.bf16 %v2275, %v2271
      %v2308 = vpack.c.bf16 %v2276, %v2272
      %v2309 = vpack.c.bf16 %v2277, %v2273
      %v2310 = vld [vmem:[%s6] sm:$0xf]
      %v2311 = vld [vmem:[%s6 + $0x4] sm:$0xf]
      %v2312 = vld [vmem:[%s6 + $0x8] sm:$0xf]
      %v2313 = vld [vmem:[%s6 + $0xc] sm:$0xf]
      %v2314 = vld [vmem:[%s6 + $0x10] sm:$0xf]
      %v2315 = vld [vmem:[%s6 + $0x14] sm:$0xf]
      %v2316 = vld [vmem:[%s6 + $0x18] sm:$0xf]
      %v2317 = vld [vmem:[%s6 + $0x1c] sm:$0xf]
      %v2318 = vld [vmem:[%s6 + $0x20] sm:$0xf]
      %v2319 = vld [vmem:[%s6 + $0x24] sm:$0xf]
      %v2320 = vld [vmem:[%s6 + $0x28] sm:$0xf]
      %v2321 = vld [vmem:[%s6 + $0x2c] sm:$0xf]
      %v2322 = vld [vmem:[%s6 + $0x30] sm:$0xf]
      %v2323 = vld [vmem:[%s6 + $0x34] sm:$0xf]
      %v2324 = vld [vmem:[%s6 + $0x38] sm:$0xf]
      %v2325 = vld [vmem:[%s6 + $0x3c] sm:$0xf]
      %v2342 = vunpack.c.l.b16 %v2310
      %v2343 = vunpack.c.l.b16 %v2311
      %v2344 = vunpack.c.l.b16 %v2312
      %v2345 = vunpack.c.l.b16 %v2313
      %v2346 = vunpack.c.l.b16 %v2314
      %v2347 = vunpack.c.l.b16 %v2315
      %v2348 = vunpack.c.l.b16 %v2316
      %v2349 = vunpack.c.l.b16 %v2317
      %v2350 = vunpack.c.l.b16 %v2318
      %v2351 = vunpack.c.l.b16 %v2319
      %v2352 = vunpack.c.l.b16 %v2320
      %v2353 = vunpack.c.l.b16 %v2321
      %v2354 = vunpack.c.l.b16 %v2322
      %v2355 = vunpack.c.l.b16 %v2323
      %v2356 = vunpack.c.l.b16 %v2324
      %v2357 = vunpack.c.l.b16 %v2325
      %v2358 = vpack.c.b16 %v2343, %v2342
      %v2359 = vpack.c.b16 %v2345, %v2344
      %v2360 = vpack.c.b16 %v2347, %v2346
      %v2361 = vpack.c.b16 %v2349, %v2348
      %v2362 = vpack.c.b16 %v2351, %v2350
      %v2363 = vpack.c.b16 %v2353, %v2352
      %v2364 = vpack.c.b16 %v2355, %v2354
      %v2365 = vpack.c.b16 %v2357, %v2356
      %2374 = vmatpush.bf16.msra.mxu0 %v2306
      %2375 = vmatpush.bf16.msra.mxu0 %v2302
      %2376 = vmatpush.bf16.msra.mxu0 %v2298
      %2377 = vmatpush.bf16.msra.mxu0 %v2294
      %2378 = vmatpush.bf16.msra.mxu0 %v2290
      %2379 = vmatpush.bf16.msra.mxu0 %v2286
      %2380 = vmatpush.bf16.msra.mxu0 %v2282
      %2381 = vmatpush.bf16.msra.mxu0 %v2278
      %2382 = vmatmul.bf16.gmra.mxu0 %v2358
      %v2383 = vpop.f32.mrf.mxu0
      %v2384 = vadd.f32 0.0, %v2383
      %v2385 = vpop.f32.mrf.mxu0
      %v2386 = vadd.f32 0.0, %v2385
      %2387 = vmatmul.bf16.gmra.mxu0 %v2359
      %v2388 = vpop.f32.mrf.mxu0
      %v2389 = vadd.f32 0.0, %v2388
      %v2390 = vpop.f32.mrf.mxu0
      %v2391 = vadd.f32 0.0, %v2390
      %2392 = vmatmul.bf16.gmra.mxu0 %v2360
      %v2393 = vpop.f32.mrf.mxu0
      %v2394 = vadd.f32 0.0, %v2393
      %v2395 = vpop.f32.mrf.mxu0
      %v2396 = vadd.f32 0.0, %v2395
      %2397 = vmatmul.bf16.gmra.mxu0 %v2361
      %v2398 = vpop.f32.mrf.mxu0
      %v2399 = vadd.f32 0.0, %v2398
      %v2400 = vpop.f32.mrf.mxu0
      %v2401 = vadd.f32 0.0, %v2400
      %2402 = vmatmul.bf16.gmra.mxu0 %v2362
      %v2403 = vpop.f32.mrf.mxu0
      %v2404 = vadd.f32 0.0, %v2403
      %v2405 = vpop.f32.mrf.mxu0
      %v2406 = vadd.f32 0.0, %v2405
      %2407 = vmatmul.bf16.gmra.mxu0 %v2363
      %v2408 = vpop.f32.mrf.mxu0
      %v2409 = vadd.f32 0.0, %v2408
      %v2410 = vpop.f32.mrf.mxu0
      %v2411 = vadd.f32 0.0, %v2410
      %2412 = vmatmul.bf16.gmra.mxu0 %v2364
      %v2413 = vpop.f32.mrf.mxu0
      %v2414 = vadd.f32 0.0, %v2413
      %v2415 = vpop.f32.mrf.mxu0
      %v2416 = vadd.f32 0.0, %v2415
      %2417 = vmatmul.bf16.gmra.mxu0 %v2365
      %v2418 = vpop.f32.mrf.mxu0
      %v2419 = vadd.f32 0.0, %v2418
      %v2420 = vpop.f32.mrf.mxu0
      %v2421 = vadd.f32 0.0, %v2420
      %2422 = vdwg.mxu0
      %2423 = vmatpush.bf16.msra.mxu0 %v2307
      %2424 = vmatpush.bf16.msra.mxu0 %v2303
      %2425 = vmatpush.bf16.msra.mxu0 %v2299
      %2426 = vmatpush.bf16.msra.mxu0 %v2295
      %2427 = vmatpush.bf16.msra.mxu0 %v2291
      %2428 = vmatpush.bf16.msra.mxu0 %v2287
      %2429 = vmatpush.bf16.msra.mxu0 %v2283
      %2430 = vmatpush.bf16.msra.mxu0 %v2279
      %2431 = vmatmul.bf16.gmra.mxu0 %v2358
      %v2432 = vpop.f32.mrf.mxu0
      %v2433 = vadd.f32 0.0, %v2432
      %v2434 = vpop.f32.mrf.mxu0
      %v2435 = vadd.f32 0.0, %v2434
      %2436 = vmatmul.bf16.gmra.mxu0 %v2359
      %v2437 = vpop.f32.mrf.mxu0
      %v2438 = vadd.f32 0.0, %v2437
      %v2439 = vpop.f32.mrf.mxu0
      %v2440 = vadd.f32 0.0, %v2439
      %2441 = vmatmul.bf16.gmra.mxu0 %v2360
      %v2442 = vpop.f32.mrf.mxu0
      %v2443 = vadd.f32 0.0, %v2442
      %v2444 = vpop.f32.mrf.mxu0
      %v2445 = vadd.f32 0.0, %v2444
      %2446 = vmatmul.bf16.gmra.mxu0 %v2361
      %v2447 = vpop.f32.mrf.mxu0
      %v2448 = vadd.f32 0.0, %v2447
      %v2449 = vpop.f32.mrf.mxu0
      %v2450 = vadd.f32 0.0, %v2449
      %2451 = vmatmul.bf16.gmra.mxu0 %v2362
      %v2452 = vpop.f32.mrf.mxu0
      %v2453 = vadd.f32 0.0, %v2452
      %v2454 = vpop.f32.mrf.mxu0
      %v2455 = vadd.f32 0.0, %v2454
      %2456 = vmatmul.bf16.gmra.mxu0 %v2363
      %v2457 = vpop.f32.mrf.mxu0
      %v2458 = vadd.f32 0.0, %v2457
      %v2459 = vpop.f32.mrf.mxu0
      %v2460 = vadd.f32 0.0, %v2459
      %2461 = vmatmul.bf16.gmra.mxu0 %v2364
      %v2462 = vpop.f32.mrf.mxu0
      %v2463 = vadd.f32 0.0, %v2462
      %v2464 = vpop.f32.mrf.mxu0
      %v2465 = vadd.f32 0.0, %v2464
      %2466 = vmatmul.bf16.gmra.mxu0 %v2365
      %v2467 = vpop.f32.mrf.mxu0
      %v2468 = vadd.f32 0.0, %v2467
      %v2469 = vpop.f32.mrf.mxu0
      %v2470 = vadd.f32 0.0, %v2469
      %2471 = vdwg.mxu0
      %2472 = vmatpush.bf16.msra.mxu0 %v2308
      %2473 = vmatpush.bf16.msra.mxu0 %v2304
      %2474 = vmatpush.bf16.msra.mxu0 %v2300
      %2475 = vmatpush.bf16.msra.mxu0 %v2296
      %2476 = vmatpush.bf16.msra.mxu0 %v2292
      %2477 = vmatpush.bf16.msra.mxu0 %v2288
      %2478 = vmatpush.bf16.msra.mxu0 %v2284
      %2479 = vmatpush.bf16.msra.mxu0 %v2280
      %2480 = vmatmul.bf16.gmra.mxu0 %v2358
      %v2481 = vpop.f32.mrf.mxu0
      %v2482 = vadd.f32 0.0, %v2481
      %v2483 = vpop.f32.mrf.mxu0
      %v2484 = vadd.f32 0.0, %v2483
      %2485 = vmatmul.bf16.gmra.mxu0 %v2359
      %v2486 = vpop.f32.mrf.mxu0
      %v2487 = vadd.f32 0.0, %v2486
      %v2488 = vpop.f32.mrf.mxu0
      %v2489 = vadd.f32 0.0, %v2488
      %2490 = vmatmul.bf16.gmra.mxu0 %v2360
      %v2491 = vpop.f32.mrf.mxu0
      %v2492 = vadd.f32 0.0, %v2491
      %v2493 = vpop.f32.mrf.mxu0
      %v2494 = vadd.f32 0.0, %v2493
      %2495 = vmatmul.bf16.gmra.mxu0 %v2361
      %v2496 = vpop.f32.mrf.mxu0
      %v2497 = vadd.f32 0.0, %v2496
      %v2498 = vpop.f32.mrf.mxu0
      %v2499 = vadd.f32 0.0, %v2498
      %2500 = vmatmul.bf16.gmra.mxu0 %v2362
      %v2501 = vpop.f32.mrf.mxu0
      %v2502 = vadd.f32 0.0, %v2501
      %v2503 = vpop.f32.mrf.mxu0
      %v2504 = vadd.f32 0.0, %v2503
      %2505 = vmatmul.bf16.gmra.mxu0 %v2363
      %v2506 = vpop.f32.mrf.mxu0
      %v2507 = vadd.f32 0.0, %v2506
      %v2508 = vpop.f32.mrf.mxu0
      %v2509 = vadd.f32 0.0, %v2508
      %2510 = vmatmul.bf16.gmra.mxu0 %v2364
      %v2511 = vpop.f32.mrf.mxu0
      %v2512 = vadd.f32 0.0, %v2511
      %v2513 = vpop.f32.mrf.mxu0
      %v2514 = vadd.f32 0.0, %v2513
      %2515 = vmatmul.bf16.gmra.mxu0 %v2365
      %v2516 = vpop.f32.mrf.mxu0
      %v2517 = vadd.f32 0.0, %v2516
      %v2518 = vpop.f32.mrf.mxu0
      %v2519 = vadd.f32 0.0, %v2518
      %2520 = vdwg.mxu0
      %2521 = vmatpush.bf16.msra.mxu0 %v2309
      %2522 = vmatpush.bf16.msra.mxu0 %v2305
      %2523 = vmatpush.bf16.msra.mxu0 %v2301
      %2524 = vmatpush.bf16.msra.mxu0 %v2297
      %2525 = vmatpush.bf16.msra.mxu0 %v2293
      %2526 = vmatpush.bf16.msra.mxu0 %v2289
      %2527 = vmatpush.bf16.msra.mxu0 %v2285
      %2528 = vmatpush.bf16.msra.mxu0 %v2281
      %2529 = vmatmul.bf16.gmra.mxu0 %v2358
      %v2530 = vpop.f32.mrf.mxu0
      %v2531 = vadd.f32 0.0, %v2530
      %v2532 = vpop.f32.mrf.mxu0
      %v2533 = vadd.f32 0.0, %v2532
      %2534 = vmatmul.bf16.gmra.mxu0 %v2359
      %v2535 = vpop.f32.mrf.mxu0
      %v2536 = vadd.f32 0.0, %v2535
      %v2537 = vpop.f32.mrf.mxu0
      %v2538 = vadd.f32 0.0, %v2537
      %2539 = vmatmul.bf16.gmra.mxu0 %v2360
      %v2540 = vpop.f32.mrf.mxu0
      %v2541 = vadd.f32 0.0, %v2540
      %v2542 = vpop.f32.mrf.mxu0
      %v2543 = vadd.f32 0.0, %v2542
      %2544 = vmatmul.bf16.gmra.mxu0 %v2361
      %v2545 = vpop.f32.mrf.mxu0
      %v2546 = vadd.f32 0.0, %v2545
      %v2547 = vpop.f32.mrf.mxu0
      %v2548 = vadd.f32 0.0, %v2547
      %2549 = vmatmul.bf16.gmra.mxu0 %v2362
      %v2550 = vpop.f32.mrf.mxu0
      %v2551 = vadd.f32 0.0, %v2550
      %v2552 = vpop.f32.mrf.mxu0
      %v2553 = vadd.f32 0.0, %v2552
      %2554 = vmatmul.bf16.gmra.mxu0 %v2363
      %v2555 = vpop.f32.mrf.mxu0
      %v2556 = vadd.f32 0.0, %v2555
      %v2557 = vpop.f32.mrf.mxu0
      %v2558 = vadd.f32 0.0, %v2557
      %2559 = vmatmul.bf16.gmra.mxu0 %v2364
      %v2560 = vpop.f32.mrf.mxu0
      %v2561 = vadd.f32 0.0, %v2560
      %v2562 = vpop.f32.mrf.mxu0
      %v2563 = vadd.f32 0.0, %v2562
      %2564 = vmatmul.bf16.gmra.mxu0 %v2365
      %v2565 = vpop.f32.mrf.mxu0
      %v2566 = vadd.f32 0.0, %v2565
      %v2567 = vpop.f32.mrf.mxu0
      %v2568 = vadd.f32 0.0, %v2567
      %2569 = vdwg.mxu0
      %v2570 = vmax.f32 %v2384, 0.0
      %v2571 = vmax.f32 %v2433, 0.0
      %v2572 = vmax.f32 %v2482, 0.0
      %v2573 = vmax.f32 %v2531, 0.0
      %v2574 = vmax.f32 %v2386, 0.0
      %v2575 = vmax.f32 %v2435, 0.0
      %v2576 = vmax.f32 %v2484, 0.0
      %v2577 = vmax.f32 %v2533, 0.0
      %v2578 = vmax.f32 %v2389, 0.0
      %v2579 = vmax.f32 %v2438, 0.0
      %v2580 = vmax.f32 %v2487, 0.0
      %v2581 = vmax.f32 %v2536, 0.0
      %v2582 = vmax.f32 %v2391, 0.0
      %v2583 = vmax.f32 %v2440, 0.0
      %v2584 = vmax.f32 %v2489, 0.0
      %v2585 = vmax.f32 %v2538, 0.0
      %v2586 = vmax.f32 %v2394, 0.0
      %v2587 = vmax.f32 %v2443, 0.0
      %v2588 = vmax.f32 %v2492, 0.0
      %v2589 = vmax.f32 %v2541, 0.0
      %v2590 = vmax.f32 %v2396, 0.0
      %v2591 = vmax.f32 %v2445, 0.0
      %v2592 = vmax.f32 %v2494, 0.0
      %v2593 = vmax.f32 %v2543, 0.0
      %v2594 = vmax.f32 %v2399, 0.0
      %v2595 = vmax.f32 %v2448, 0.0
      %v2596 = vmax.f32 %v2497, 0.0
      %v2597 = vmax.f32 %v2546, 0.0
      %v2598 = vmax.f32 %v2401, 0.0
      %v2599 = vmax.f32 %v2450, 0.0
      %v2600 = vmax.f32 %v2499, 0.0
      %v2601 = vmax.f32 %v2548, 0.0
      %v2602 = vmax.f32 %v2404, 0.0
      %v2603 = vmax.f32 %v2453, 0.0
      %v2604 = vmax.f32 %v2502, 0.0
      %v2605 = vmax.f32 %v2551, 0.0
      %v2606 = vmax.f32 %v2406, 0.0
      %v2607 = vmax.f32 %v2455, 0.0
      %v2608 = vmax.f32 %v2504, 0.0
      %v2609 = vmax.f32 %v2553, 0.0
      %v2610 = vmax.f32 %v2409, 0.0
      %v2611 = vmax.f32 %v2458, 0.0
      %v2612 = vmax.f32 %v2507, 0.0
      %v2613 = vmax.f32 %v2556, 0.0
      %v2614 = vmax.f32 %v2411, 0.0
      %v2615 = vmax.f32 %v2460, 0.0
      %v2616 = vmax.f32 %v2509, 0.0
      %v2617 = vmax.f32 %v2558, 0.0
      %v2618 = vmax.f32 %v2414, 0.0
      %v2619 = vmax.f32 %v2463, 0.0
      %v2620 = vmax.f32 %v2512, 0.0
      %v2621 = vmax.f32 %v2561, 0.0
      %v2622 = vmax.f32 %v2416, 0.0
      %v2623 = vmax.f32 %v2465, 0.0
      %v2624 = vmax.f32 %v2514, 0.0
      %v2625 = vmax.f32 %v2563, 0.0
      %v2626 = vmax.f32 %v2419, 0.0
      %v2627 = vmax.f32 %v2468, 0.0
      %v2628 = vmax.f32 %v2517, 0.0
      %v2629 = vmax.f32 %v2566, 0.0
      %v2630 = vmax.f32 %v2421, 0.0
      %v2631 = vmax.f32 %v2470, 0.0
      %v2632 = vmax.f32 %v2519, 0.0
      %v2633 = vmax.f32 %v2568, 0.0
      %v2634 = vpack.c.bf16 %v2574, %v2570
      %v2635 = vpack.c.bf16 %v2575, %v2571
      %v2636 = vpack.c.bf16 %v2576, %v2572
      %v2637 = vpack.c.bf16 %v2577, %v2573
      %v2638 = vpack.c.bf16 %v2582, %v2578
      %v2639 = vpack.c.bf16 %v2583, %v2579
      %v2640 = vpack.c.bf16 %v2584, %v2580
      %v2641 = vpack.c.bf16 %v2585, %v2581
      %v2642 = vpack.c.bf16 %v2590, %v2586
      %v2643 = vpack.c.bf16 %v2591, %v2587
      %v2644 = vpack.c.bf16 %v2592, %v2588
      %v2645 = vpack.c.bf16 %v2593, %v2589
      %v2646 = vpack.c.bf16 %v2598, %v2594
      %v2647 = vpack.c.bf16 %v2599, %v2595
      %v2648 = vpack.c.bf16 %v2600, %v2596
      %v2649 = vpack.c.bf16 %v2601, %v2597
      %v2650 = vpack.c.bf16 %v2606, %v2602
      %v2651 = vpack.c.bf16 %v2607, %v2603
      %v2652 = vpack.c.bf16 %v2608, %v2604
      %v2653 = vpack.c.bf16 %v2609, %v2605
      %v2654 = vpack.c.bf16 %v2614, %v2610
      %v2655 = vpack.c.bf16 %v2615, %v2611
      %v2656 = vpack.c.bf16 %v2616, %v2612
      %v2657 = vpack.c.bf16 %v2617, %v2613
      %v2658 = vpack.c.bf16 %v2622, %v2618
      %v2659 = vpack.c.bf16 %v2623, %v2619
      %v2660 = vpack.c.bf16 %v2624, %v2620
      %v2661 = vpack.c.bf16 %v2625, %v2621
      %v2662 = vpack.c.bf16 %v2630, %v2626
      %v2663 = vpack.c.bf16 %v2631, %v2627
      %v2664 = vpack.c.bf16 %v2632, %v2628
      %v2665 = vpack.c.bf16 %v2633, %v2629
      %v2666 = vld [vmem:[%s7] sm:$0x3]
      %2667 = vmatpush.bf16.msra.mxu0 %v2662
      %2668 = vmatpush.bf16.msra.mxu0 %v2658
      %2669 = vmatpush.bf16.msra.mxu0 %v2654
      %2670 = vmatpush.bf16.msra.mxu0 %v2650
      %2671 = vmatpush.bf16.msra.mxu0 %v2646
      %2672 = vmatpush.bf16.msra.mxu0 %v2642
      %2673 = vmatpush.bf16.msra.mxu0 %v2638
      %2674 = vmatpush.bf16.msra.mxu0 %v2634
      %2675 = vmatmul.bf16.gmra.mxu0 %v2666
      %v2676 = vpop.f32.mrf.mxu0
      %v2677 = vadd.f32 0.0, %v2676
      %v2678 = vpop.f32.mrf.mxu0
      %2679 = vdwg.mxu0
      %2680 = vmatpush.bf16.msra.mxu0 %v2663
      %2681 = vmatpush.bf16.msra.mxu0 %v2659
      %2682 = vmatpush.bf16.msra.mxu0 %v2655
      %2683 = vmatpush.bf16.msra.mxu0 %v2651
      %2684 = vmatpush.bf16.msra.mxu0 %v2647
      %2685 = vmatpush.bf16.msra.mxu0 %v2643
      %2686 = vmatpush.bf16.msra.mxu0 %v2639
      %2687 = vmatpush.bf16.msra.mxu0 %v2635
      %2688 = vmatmul.bf16.gmra.mxu0 %v2666
      %v2689 = vpop.f32.mrf.mxu0
      %v2690 = vadd.f32 0.0, %v2689
      %v2691 = vpop.f32.mrf.mxu0
      %2692 = vdwg.mxu0
      %2693 = vmatpush.bf16.msra.mxu0 %v2664
      %2694 = vmatpush.bf16.msra.mxu0 %v2660
      %2695 = vmatpush.bf16.msra.mxu0 %v2656
      %2696 = vmatpush.bf16.msra.mxu0 %v2652
      %2697 = vmatpush.bf16.msra.mxu0 %v2648
      %2698 = vmatpush.bf16.msra.mxu0 %v2644
      %2699 = vmatpush.bf16.msra.mxu0 %v2640
      %2700 = vmatpush.bf16.msra.mxu0 %v2636
      %2701 = vmatmul.bf16.gmra.mxu0 %v2666
      %v2702 = vpop.f32.mrf.mxu0
      %v2703 = vadd.f32 0.0, %v2702
      %v2704 = vpop.f32.mrf.mxu0
      %2705 = vdwg.mxu0
      %2706 = vmatpush.bf16.msra.mxu0 %v2665
      %2707 = vmatpush.bf16.msra.mxu0 %v2661
      %2708 = vmatpush.bf16.msra.mxu0 %v2657
      %2709 = vmatpush.bf16.msra.mxu0 %v2653
      %2710 = vmatpush.bf16.msra.mxu0 %v2649
      %2711 = vmatpush.bf16.msra.mxu0 %v2645
      %2712 = vmatpush.bf16.msra.mxu0 %v2641
      %2713 = vmatpush.bf16.msra.mxu0 %v2637
      %2714 = vmatmul.bf16.gmra.mxu0 %v2666
      %v2715 = vpop.f32.mrf.mxu0
      %v2716 = vadd.f32 0.0, %v2715
      %v2717 = vpop.f32.mrf.mxu0
      %2718 = vdwg.mxu0
      %v2723 = vrot.slane %v2690, 4
      %v2724 = vrot.slane %v2716, 4
      %vm2725 = vcmask 1043456
      %v2726 = vsel %vm2725, %v2677, %v2723
      %v2727 = vsel %vm2725, %v2703, %v2724
      %2730 = vst [vmem:[%s400] sm:$0x77] %v2726
      %2731 = vst [vmem:[%s400 + $0x8] sm:$0x77] %v2727
      %v2732 = vadd.f32 %v402, %v2726
      %v2733 = vadd.f32 %v403, %v2727
      %2734 = vst [vmem:[%s390] sm:$0x77] %v2732
      %2735 = vst [vmem:[%s390 + $0x8] sm:$0x77] %v2733
      %s2736 = smul.u32 4, %s25
      %p2737 = scmp.lt.s32.totalorder %s26, 1
      %s2738 = scalar_select %p2737, %s26, 1
      %p2739 = scmp.lt.s32.totalorder %s2736, 3
      %s2740 = scalar_select %p2739, %s2736, 3
      %s2741 = smul.addr %s2738, 4
      %s2742 = sadd.s32 %s2740, %s2741
      %s2743 = smul.addr %s2742, 4
      %s2744 = scalar_lea.vmem %s8, %s2743
      %s2745 = smul.u32 4, %s25
      %p2746 = scmp.lt.s32.totalorder %s26, 1
      %s2747 = scalar_select %p2746, %s26, 1
      %p2748 = scmp.lt.s32.totalorder %s2745, 3
      %s2749 = scalar_select %p2748, %s2745, 3
      %s2750 = smul.addr %s2747, 4
      %s2751 = sadd.s32 %s2749, %s2750
      %s2752 = smul.addr %s2751, 4
      %s2753 = scalar_lea.vmem %s9, %s2752
      // Predicated region
      $region53: #{tpu_custom_call.1} parent=51 // pred_check
        %p2754 = pneg %p231
      $region54: #{tpu_custom_call.1} parent=51 // pred_check_branch
        %2756 = sbr.rel (%p2754) target = $region56
      $region55: #{tpu_custom_call.1} parent=51 // pred_region
        %s2757 = smul.u32 4, %s25
      $region56: #{tpu_custom_call.1} parent=51 // pred_fallthru
        _
      // Predicated region
      $region57: #{tpu_custom_call.1} parent=51 // pred_check
        %p2758 = pneg %p259
      $region58: #{tpu_custom_call.1} parent=51 // pred_check_branch
        %2760 = sbr.rel (%p2758) target = $region60
      $region59: #{tpu_custom_call.1} parent=51 // pred_region
        %s2761 = smul.u32 4, %s25
      $region60: #{tpu_custom_call.1} parent=51 // pred_fallthru
        _
    $region52: #{tpu_custom_call.1} parent=5 // pred_fallthru
      _
    %p2762 = scmp.le.s32.totalorder 2, %s16
    // Predicated region
    $region61: #{tpu_custom_call.1} parent=5 // pred_check
      %p2763 = pneg %p2762
    $region62: #{tpu_custom_call.1} parent=5 // pred_check_branch
      %2765 = sbr.rel (%p2763) target = $region64
    $region63: #{tpu_custom_call.1} parent=5 // pred_region
      %s2766 = ssub.s32 %s16, 2
      // Predicated region
      $region65: #{tpu_custom_call.1} parent=63 // pred_check
        %p2767 = pneg %p237
      $region66: #{tpu_custom_call.1} parent=63 // pred_check_branch
        %2769 = sbr.rel (%p2767) target = $region68
      $region67: #{tpu_custom_call.1} parent=63 // pred_region
        %s2770 = smul.u32 4, %s27
        %p2771 = scmp.lt.s32.totalorder %s28, 1
        %s2772 = scalar_select %p2771, %s28, 1
        %p2773 = scmp.lt.s32.totalorder %s2770, 3
        %s2774 = scalar_select %p2773, %s2770, 3
        %s2775 = smul.addr %s2772, 4
        %s2776 = sadd.s32 %s2774, %s2775
        %s2777 = smul.addr %s2776, 4
        %s2778 = scalar_lea.vmem %s8, %s2777
      $region68: #{tpu_custom_call.1} parent=63 // pred_fallthru
        _
      // Predicated region
      $region69: #{tpu_custom_call.1} parent=63 // pred_check
        %p2779 = pneg %p265
      $region70: #{tpu_custom_call.1} parent=63 // pred_check_branch
        %2781 = sbr.rel (%p2779) target = $region72
      $region71: #{tpu_custom_call.1} parent=63 // pred_region
        %s2782 = smul.u32 4, %s27
        %p2783 = scmp.lt.s32.totalorder %s28, 1
        %s2784 = scalar_select %p2783, %s28, 1
        %p2785 = scmp.lt.s32.totalorder %s2782, 3
        %s2786 = scalar_select %p2785, %s2782, 3
        %s2787 = smul.addr %s2784, 4
        %s2788 = sadd.s32 %s2786, %s2787
        %s2789 = smul.addr %s2788, 4
        %s2790 = scalar_lea.vmem %s9, %s2789
      $region72: #{tpu_custom_call.1} parent=63 // pred_fallthru
        _
    $region64: #{tpu_custom_call.1} parent=5 // pred_fallthru
      _
  $region6: #{tpu_custom_call.1} parent=0 // loop_footer
    %s20 = sadd.s32 1, %s16
  $region7: #{tpu_custom_call.1} parent=0 // loop_footer_branch
    %15 = sbr.rel target = $region3
  $region8: #{tpu_custom_call.1} parent=0 // loop_exit
    _

</llo_original>
